<compile_context>
chip_gen: v7x
topology: tpu7x:2x2x1
jax: 0.10.0
libtpu: 0.0.40
codegen_flags: <defaults>
</compile_context>

<pallas_src>
import functools

import jax
import jax.numpy as jnp
from jax.experimental import pallas as pl
from jax.experimental.pallas import tpu as pltpu


def _temporal_conv_kernel(x_ref, wf_ref, bf_ref, o_ref, *, k_taps, row_shift,
                          tn, cout_p):
    """One batch element per grid step.

    x_ref : ((T+2*pad)*N, Cin)  time-padded input rows (t-major, n-minor)
    wf_ref: (K, Cin, 3*Cp)      fused (conv1|conv2|conv3) weights
    bf_ref: (1, 3*Cp)           fused bias, float32
    o_ref : (T*N, Cp)           gated output H, float32
    """
    # Fold the fused bias into the f32 accumulator once (broadcasts on add).
    acc = bf_ref[...].astype(jnp.float32)

    # K-tap temporal accumulation: tap k is the padded slab shifted by k*N
    # rows -> a static, sublane-aligned window read (no copies, no masking).
    for k in range(k_taps):
        xs = x_ref[pl.ds(k * row_shift, tn), :]
        acc = acc + jnp.dot(xs, wf_ref[k], preferred_element_type=jnp.float32)

    # Gate slices are whole-vreg (128-aligned) lane groups of the accumulator.
    p = acc[:, 0 * cout_p:1 * cout_p]
    q = acc[:, 1 * cout_p:2 * cout_p]
    r = acc[:, 2 * cout_p:3 * cout_p]
    h = jnp.maximum(p * jax.nn.sigmoid(q) + r, 0.0)
    o_ref[...] = h.astype(o_ref.dtype)


def _repack_weight(w_oihw, cout_p, dtype):
    # PyTorch Conv2d weight (Cout, Cin, 1, K) -> (K, Cin, Cout_p) so that
    # out[.., o] = sum_{k,c} X[t+k-pad, n, c] * w[o, c, 0, k]; pad Cout->Cout_p.
    c_out, c_in, _, k = w_oihw.shape
    w = jnp.transpose(w_oihw[:, :, 0, :], (2, 1, 0))          # (K, Cin, Cout)
    w = jnp.pad(w, ((0, 0), (0, 0), (0, cout_p - c_out)))
    return w.astype(dtype)


@functools.partial(jax.jit, static_argnames=("kernel_size", "compute_dtype"))
def temporal_conv(X, w1, b1, w2, b2, w3, b3, *, kernel_size=3,
                  compute_dtype=jnp.bfloat16):
    """X: (B, T, N, Cin) float32 -> (B, T, N, Cout) float32."""
    B, T, N, Cin = X.shape
    K = kernel_size
    pad = K // 2
    Cout = w1.shape[0]
    Cout_p = ((Cout + 127) // 128) * 128     # per-gate lane-dense width
    Fout = 3 * Cout_p

    # Fused, output-padded weights (K, Cin, 3*Cout_p) and bias (1, 3*Cout_p).
    Wf = jnp.concatenate(
        [_repack_weight(w, Cout_p, compute_dtype) for w in (w1, w2, w3)],
        axis=-1)
    Bf = jnp.concatenate(
        [jnp.pad(b.astype(jnp.float32), (0, Cout_p - Cout))
         for b in (b1, b2, b3)]).reshape(1, Fout)

    TN = T * N
    TNp = (T + 2 * pad) * N
    # Zero-pad the time axis once in XLA; the kernel reads K overlapping,
    # statically-offset windows of the padded slab (no in-kernel shift copies).
    Xp = jnp.pad(X, ((0, 0), (pad, pad), (0, 0), (0, 0)))
    Xr = Xp.reshape(B, TNp, Cin).astype(compute_dtype)

    kernel = functools.partial(_temporal_conv_kernel, k_taps=K, row_shift=N,
                               tn=TN, cout_p=Cout_p)

    out = pl.pallas_call(
        kernel,
        out_shape=jax.ShapeDtypeStruct((B, TN, Cout_p), jnp.float32),
        grid_spec=pltpu.PrefetchScalarGridSpec(
            num_scalar_prefetch=0,
            grid=(B,),
            in_specs=[
                pl.BlockSpec((None, TNp, Cin), lambda b: (b, 0, 0)),
                pl.BlockSpec((K, Cin, Fout), lambda b: (0, 0, 0)),
                pl.BlockSpec((1, Fout), lambda b: (0, 0)),
            ],
            out_specs=pl.BlockSpec((None, TN, Cout_p), lambda b: (b, 0, 0)),
        ),
        compiler_params=pltpu.CompilerParams(
            dimension_semantics=("parallel",)),
    )(Xr, Wf, Bf)

    return out[:, :, :Cout].reshape(B, T, N, Cout)


def _reference_forward(X, w1, b1, w2, b2, w3, b3, kernel_size=3):
    # Pure-JAX reference matching the PyTorch module exactly (NCHW conv).
    pad = kernel_size // 2
    Xn = jnp.transpose(X, (0, 3, 2, 1))  # (B, Cin, N, T)

    def conv(x, w, b):
        y = jax.lax.conv_general_dilated(
            x, w, window_strides=(1, 1),
            padding=((0, 0), (pad, pad)),
            dimension_numbers=("NCHW", "OIHW", "NCHW"))
        return y + b[None, :, None, None]

    P = conv(Xn, w1, b1)
    Q = jax.nn.sigmoid(conv(Xn, w2, b2))
    R = conv(Xn, w3, b3)
    H = jnp.maximum(P * Q + R, 0.0)
    return jnp.transpose(H, (0, 3, 2, 1))  # (B, T, N, Cout)


if __name__ == "__main__":
    B, T, N = 2, 8, 16       # batch, temporal length, num nodes
    Cin, Cout, K = 4, 8, 3   # in_channels, out_channels, kernel_size

    key = jax.random.PRNGKey(0)
    kx, k1, k2, k3, kb1, kb2, kb3 = jax.random.split(key, 7)

    X = jax.random.normal(kx, (B, T, N, Cin), dtype=jnp.float32)

    scale = 1.0 / jnp.sqrt(jnp.float32(Cin * K))
    w1 = jax.random.normal(k1, (Cout, Cin, 1, K), jnp.float32) * scale
    w2 = jax.random.normal(k2, (Cout, Cin, 1, K), jnp.float32) * scale
    w3 = jax.random.normal(k3, (Cout, Cin, 1, K), jnp.float32) * scale
    b1 = jax.random.normal(kb1, (Cout,), jnp.float32) * scale
    b2 = jax.random.normal(kb2, (Cout,), jnp.float32) * scale
    b3 = jax.random.normal(kb3, (Cout,), jnp.float32) * scale

    H_ref = _reference_forward(X, w1, b1, w2, b2, w3, b3, kernel_size=K)

    # Exact-path check (f32 inputs): structure/indexing must match the conv.
    H32 = temporal_conv(X, w1, b1, w2, b2, w3, b3, kernel_size=K,
                        compute_dtype=jnp.float32)
    H32 = jax.block_until_ready(H32)
    assert H32.shape == (B, T, N, Cout), H32.shape
    assert jnp.allclose(H32, H_ref, rtol=1e-5, atol=1e-5), (
        float(jnp.max(jnp.abs(H32 - H_ref))))

    # Performance path (bf16 inputs, f32 accumulation): looser tolerance.
    H = temporal_conv(X, w1, b1, w2, b2, w3, b3, kernel_size=K)
    H = jax.block_until_ready(H)
    assert H.shape == (B, T, N, Cout), H.shape
    assert jnp.allclose(H, H_ref, rtol=5e-2, atol=5e-2), (
        float(jnp.max(jnp.abs(H - H_ref))))

    print("KERNEL_OK")
</pallas_src>

<mosaic_0001>
module attributes {stable_mosaic.version = 11 : i64} {
  func.func @_temporal_conv_kernel(%arg0: i32, %arg1: memref<1x160x4xf32, #tpu.memory_space<vmem>>, %arg2: memref<3x4x384xf32, #tpu.memory_space<vmem>>, %arg3: memref<1x384xf32, #tpu.memory_space<vmem>>, %arg4: memref<1x128x128xf32, #tpu.memory_space<vmem>>) attributes {dimension_semantics = [#tpu.dimension_semantics<parallel>], iteration_bounds = array<i64: 2>, scalar_prefetch = 0 : i64, scratch_operands = 0 : i64, tpu.core_type = #tpu.core_type<tc>, window_params = [{transform_indices = @transform_0, window_bounds = array<i64: 1, 160, 4>}, {pipeline_mode = #tpu.pipeline_mode<synchronous>, transform_indices = @transform_1, window_bounds = array<i64: 3, 4, 384>}, {pipeline_mode = #tpu.pipeline_mode<synchronous>, transform_indices = @transform_2, window_bounds = array<i64: 1, 384>}, {transform_indices = @transform_3, window_bounds = array<i64: 1, 128, 128>}]} {
    %c0 = arith.constant 0 : index
    %c0_0 = arith.constant 0 : index
    %0 = vector.load %arg3[%c0, %c0_0] : memref<1x384xf32, #tpu.memory_space<vmem>>, vector<1x384xf32>
    %c0_1 = arith.constant 0 : index
    %c0_2 = arith.constant 0 : index
    %c0_3 = arith.constant 0 : index
    %1 = vector.load %arg1[%c0_1, %c0_2, %c0_3] : memref<1x160x4xf32, #tpu.memory_space<vmem>>, vector<1x128x4xf32>
    %2 = vector.shape_cast %1 : vector<1x128x4xf32> to vector<128x4xf32>
    %c0_4 = arith.constant 0 : index
    %c0_5 = arith.constant 0 : index
    %c0_6 = arith.constant 0 : index
    %3 = vector.load %arg2[%c0_4, %c0_5, %c0_6] : memref<3x4x384xf32, #tpu.memory_space<vmem>>, vector<1x4x384xf32>
    %4 = vector.shape_cast %3 : vector<1x4x384xf32> to vector<4x384xf32>
    %cst = arith.constant dense<0.000000e+00> : vector<128x384xf32>
    %5 = tpu.matmul %2, %4, %cst {dimension_numbers = #tpu.dot_dimension_numbers<[1], [0], [0], [1], [0, 0, 1, 1], [], []>} : vector<128x4xf32>, vector<4x384xf32>, vector<128x384xf32> -> vector<128x384xf32>
    %6 = vector.broadcast %0 : vector<1x384xf32> to vector<128x384xf32>
    %7 = arith.addf %6, %5 : vector<128x384xf32>
    %c0_7 = arith.constant 0 : index
    %c16 = arith.constant 16 : index
    %c0_8 = arith.constant 0 : index
    %8 = vector.load %arg1[%c0_7, %c16, %c0_8] : memref<1x160x4xf32, #tpu.memory_space<vmem>>, vector<1x128x4xf32>
    %9 = vector.shape_cast %8 : vector<1x128x4xf32> to vector<128x4xf32>
    %c1 = arith.constant 1 : index
    %c0_9 = arith.constant 0 : index
    %c0_10 = arith.constant 0 : index
    %10 = vector.load %arg2[%c1, %c0_9, %c0_10] : memref<3x4x384xf32, #tpu.memory_space<vmem>>, vector<1x4x384xf32>
    %11 = vector.shape_cast %10 : vector<1x4x384xf32> to vector<4x384xf32>
    %cst_11 = arith.constant dense<0.000000e+00> : vector<128x384xf32>
    %12 = tpu.matmul %9, %11, %cst_11 {dimension_numbers = #tpu.dot_dimension_numbers<[1], [0], [0], [1], [0, 0, 1, 1], [], []>} : vector<128x4xf32>, vector<4x384xf32>, vector<128x384xf32> -> vector<128x384xf32>
    %13 = arith.addf %7, %12 : vector<128x384xf32>
    %c0_12 = arith.constant 0 : index
    %c32 = arith.constant 32 : index
    %c0_13 = arith.constant 0 : index
    %14 = vector.load %arg1[%c0_12, %c32, %c0_13] : memref<1x160x4xf32, #tpu.memory_space<vmem>>, vector<1x128x4xf32>
    %15 = vector.shape_cast %14 : vector<1x128x4xf32> to vector<128x4xf32>
    %c2 = arith.constant 2 : index
    %c0_14 = arith.constant 0 : index
    %c0_15 = arith.constant 0 : index
    %16 = vector.load %arg2[%c2, %c0_14, %c0_15] : memref<3x4x384xf32, #tpu.memory_space<vmem>>, vector<1x4x384xf32>
    %17 = vector.shape_cast %16 : vector<1x4x384xf32> to vector<4x384xf32>
    %cst_16 = arith.constant dense<0.000000e+00> : vector<128x384xf32>
    %18 = tpu.matmul %15, %17, %cst_16 {dimension_numbers = #tpu.dot_dimension_numbers<[1], [0], [0], [1], [0, 0, 1, 1], [], []>} : vector<128x4xf32>, vector<4x384xf32>, vector<128x384xf32> -> vector<128x384xf32>
    %19 = arith.addf %13, %18 : vector<128x384xf32>
    %20 = vector.extract_strided_slice %19 {offsets = [0, 0], sizes = [128, 128], strides = [1, 1]} : vector<128x384xf32> to vector<128x128xf32>
    %21 = vector.extract_strided_slice %19 {offsets = [0, 128], sizes = [128, 128], strides = [1, 1]} : vector<128x384xf32> to vector<128x128xf32>
    %22 = vector.extract_strided_slice %19 {offsets = [0, 256], sizes = [128, 128], strides = [1, 1]} : vector<128x384xf32> to vector<128x128xf32>
    %23 = arith.negf %21 : vector<128x128xf32>
    %24 = math.exp %23 : vector<128x128xf32>
    %cst_17 = arith.constant 1.000000e+00 : f32
    %25 = vector.broadcast %cst_17 : f32 to vector<128x128xf32>
    %26 = arith.addf %25, %24 : vector<128x128xf32>
    %27 = arith.divf %25, %26 : vector<128x128xf32>
    %28 = arith.mulf %20, %27 : vector<128x128xf32>
    %29 = arith.addf %28, %22 : vector<128x128xf32>
    %cst_18 = arith.constant 0.000000e+00 : f32
    %30 = vector.broadcast %cst_18 : f32 to vector<128x128xf32>
    %31 = arith.maximumf %29, %30 : vector<128x128xf32>
    %c0_19 = arith.constant 0 : index
    %c0_20 = arith.constant 0 : index
    %c0_21 = arith.constant 0 : index
    %32 = vector.load %arg4[%c0_19, %c0_20, %c0_21] : memref<1x128x128xf32, #tpu.memory_space<vmem>>, vector<1x128x128xf32>
    %33 = vector.shape_cast %32 : vector<1x128x128xf32> to vector<128x128xf32>
    %34 = vector.shape_cast %31 : vector<128x128xf32> to vector<1x128x128xf32>
    tpu.vector_store %arg4[%c0_19, %c0_20, %c0_21], %34 {strides = array<i32>} : memref<1x128x128xf32, #tpu.memory_space<vmem>>, vector<1x128x128xf32>,
    return
  }
  func.func @transform_0(%arg0: i32) -> (i32, i32, i32) {
    %c0_i32 = arith.constant 0 : i32
    %c0_i32_0 = arith.constant 0 : i32
    %c0_i32_1 = arith.constant 0 : i32
    return %arg0, %c0_i32, %c0_i32_0 : i32, i32, i32
  }
  func.func @transform_1(%arg0: i32) -> (i32, i32, i32) {
    %c0_i32 = arith.constant 0 : i32
    %c0_i32_0 = arith.constant 0 : i32
    %c0_i32_1 = arith.constant 0 : i32
    %c0_i32_2 = arith.constant 0 : i32
    return %c0_i32, %c0_i32_0, %c0_i32_1 : i32, i32, i32
  }
  func.func @transform_2(%arg0: i32) -> (i32, i32) {
    %c0_i32 = arith.constant 0 : i32
    %c0_i32_0 = arith.constant 0 : i32
    %c0_i32_1 = arith.constant 0 : i32
    return %c0_i32, %c0_i32_0 : i32, i32
  }
  func.func @transform_3(%arg0: i32) -> (i32, i32, i32) {
    %c0_i32 = arith.constant 0 : i32
    %c0_i32_0 = arith.constant 0 : i32
    %c0_i32_1 = arith.constant 0 : i32
    return %arg0, %c0_i32, %c0_i32_0 : i32, i32, i32
  }
}

</mosaic_0001>

<llo_original>
// kernel: temporal_conv.1
$region0: #{temporal_conv.1}
  #allocation0 [shape = 'u32[]', space=smem, size = 0x4, offset = 0x4, fixed_abs, tag = 'smem constant byte address 0x4 - core index']
  #allocation1 [shape = 'u32[144,128]{1,0:T(1,128)}', space=vmem, size = 0x12000, scoped, tag = 'internal scratch']
  %s0 = inlined_call_operand.vmem [shape: f32[2,160,4], index: 0, kind: input, shape index: {}]
  %s1 = inlined_call_operand.vmem [shape: f32[3,4,384], index: 1, kind: input, shape index: {}]
  %s2 = inlined_call_operand.vmem [shape: f32[1,384], index: 2, kind: input, shape index: {}]
  %s3 = inlined_call_operand.vmem [shape: f32[2,128,128], index: 3, kind: output, shape index: {}]
  %s4 = sld [smem:[#allocation0]]
  $region45: #{temporal_conv.1} parent=0
    _
  %s6 = ssub.s32 1, %s4
  %s7 = scalar_select 0, %s6, %s4
  loop: start=0, step=1, limit=4
  $region2: #{temporal_conv.1} parent=0 // loop_pre_header
    _
  $region3: #{temporal_conv.1} parent=0 // loop_header
    %s9 = sphi 0, %s13
    %p10 = scmp.ge.s32.totalorder %s9, 4
    %s19 = sphi 0, %s21
    %s22 = sphi 0, %s19
    %s23 = sphi 0, %s22
    %s39 = sphi 0, %s23
    %s43 = sphi 0, %s43
    %s45 = sphi 0, %s43
    %s46 = sphi 0, %s45
    %s60 = sphi 0, %s46
    %s64 = sphi 0, %s64
    %s66 = sphi 0, %s64
    %s67 = sphi 0, %s66
    %s81 = sphi 0, %s67
    %s87 = sphi 0, %s89
    %s90 = sphi 0, %s87
    %s91 = sphi 0, %s90
    %s107 = sphi 0, %s91
  $region4: #{temporal_conv.1} parent=0 // loop_header_branch
    %12 = sbr.rel (%p10) target = $region8
  $region5: #{temporal_conv.1} parent=0 // loop_body
    %s14 = ssub.s32 %s9, 1
    %s15 = ssub.s32 %s9, 2
    %s16 = sadd.s32 %s9, 1
    %s17 = ssub.s32 %s9, %s16
    %p18 = scmp.eq.s32.totalorder %s17, 0
    %s20 = sadd.s32 %s19, 1
    %s21 = scalar_select %p18, %s19, %s20
    %p24 = pneg %p18
    %p25 = scmp.eq.s32.totalorder %s9, 1
    %p26 = por %p24, %p25
    %p27 = scmp.ne.s32.totalorder %s19, %s22
    %p28 = scmp.eq.s32.totalorder %s9, 0
    %p29 = por %p27, %p28
    %p30 = scmp.ne.s32.totalorder %s19, %s22
    %p31 = scmp.eq.s32.totalorder %s14, 1
    %p32 = por %p30, %p31
    %p33 = scmp.ne.s32.totalorder %s22, %s23
    %p34 = scmp.eq.s32.totalorder %s14, 0
    %p35 = por %p33, %p34
    %p36 = scmp.ne.s32.totalorder %s22, %s23
    %p37 = scmp.eq.s32.totalorder %s15, 1
    %p38 = por %p36, %p37
    %p40 = scmp.ne.s32.totalorder %s23, %s39
    %p41 = scmp.eq.s32.totalorder %s15, 0
    %p42 = por %p40, %p41
    %s44 = sadd.s32 %s43, 1
    %p47 = scmp.eq.s32.totalorder %s9, 1
    %p48 = scmp.ne.s32.totalorder %s43, %s45
    %p49 = scmp.eq.s32.totalorder %s9, 0
    %p50 = por %p48, %p49
    %p51 = scmp.ne.s32.totalorder %s43, %s45
    %p52 = scmp.eq.s32.totalorder %s14, 1
    %p53 = por %p51, %p52
    %p54 = scmp.ne.s32.totalorder %s45, %s46
    %p55 = scmp.eq.s32.totalorder %s14, 0
    %p56 = por %p54, %p55
    %p57 = scmp.ne.s32.totalorder %s45, %s46
    %p58 = scmp.eq.s32.totalorder %s15, 1
    %p59 = por %p57, %p58
    %p61 = scmp.ne.s32.totalorder %s46, %s60
    %p62 = scmp.eq.s32.totalorder %s15, 0
    %p63 = por %p61, %p62
    %s65 = sadd.s32 %s64, 1
    %p68 = scmp.eq.s32.totalorder %s9, 1
    %p69 = scmp.ne.s32.totalorder %s64, %s66
    %p70 = scmp.eq.s32.totalorder %s9, 0
    %p71 = por %p69, %p70
    %p72 = scmp.ne.s32.totalorder %s64, %s66
    %p73 = scmp.eq.s32.totalorder %s14, 1
    %p74 = por %p72, %p73
    %p75 = scmp.ne.s32.totalorder %s66, %s67
    %p76 = scmp.eq.s32.totalorder %s14, 0
    %p77 = por %p75, %p76
    %p78 = scmp.ne.s32.totalorder %s66, %s67
    %p79 = scmp.eq.s32.totalorder %s15, 1
    %p80 = por %p78, %p79
    %p82 = scmp.ne.s32.totalorder %s67, %s81
    %p83 = scmp.eq.s32.totalorder %s15, 0
    %p84 = por %p82, %p83
    %s85 = ssub.s32 %s9, %s16
    %p86 = scmp.eq.s32.totalorder %s85, 0
    %s88 = sadd.s32 %s87, 1
    %s89 = scalar_select %p86, %s87, %s88
    %p92 = pneg %p86
    %p93 = scmp.eq.s32.totalorder %s9, 1
    %p94 = por %p92, %p93
    %p95 = scmp.ne.s32.totalorder %s87, %s90
    %p96 = scmp.eq.s32.totalorder %s9, 0
    %p97 = por %p95, %p96
    %p98 = scmp.ne.s32.totalorder %s87, %s90
    %p99 = scmp.eq.s32.totalorder %s14, 1
    %p100 = por %p98, %p99
    %p101 = scmp.ne.s32.totalorder %s90, %s91
    %p102 = scmp.eq.s32.totalorder %s14, 0
    %p103 = por %p101, %p102
    %p104 = scmp.ne.s32.totalorder %s90, %s91
    %p105 = scmp.eq.s32.totalorder %s15, 1
    %p106 = por %p104, %p105
    %p108 = scmp.ne.s32.totalorder %s91, %s107
    %p109 = scmp.eq.s32.totalorder %s15, 0
    %p110 = por %p108, %p109
    %p111 = scmp.le.s32.totalorder 1, %s9
    %p112 = scmp.lt.s32.totalorder %s9, 3
    %p113 = pnand %p111, %p112
    %p114 = pneg %p113
    // Predicated region
    $region9: #{temporal_conv.1} parent=5 // pred_check
      _
    $region10: #{temporal_conv.1} parent=5 // pred_check_branch
      %116 = sbr.rel (%p113) target = $region12
    $region11: #{temporal_conv.1} parent=5 // pred_region
      %s117 = ssub.s32 %s9, 1
      // Predicated region
      $region13: #{temporal_conv.1} parent=11 // pred_check
        %p118 = pneg %p56
      $region14: #{temporal_conv.1} parent=11 // pred_check_branch
        %120 = sbr.rel (%p118) target = $region16
      $region15: #{temporal_conv.1} parent=11 // pred_region
        _
      $region16: #{temporal_conv.1} parent=11 // pred_fallthru
        _
      // Predicated region
      $region17: #{temporal_conv.1} parent=11 // pred_check
        %p121 = pneg %p77
      $region18: #{temporal_conv.1} parent=11 // pred_check_branch
        %123 = sbr.rel (%p121) target = $region20
      $region19: #{temporal_conv.1} parent=11 // pred_region
        _
      $region20: #{temporal_conv.1} parent=11 // pred_fallthru
        _
    $region12: #{temporal_conv.1} parent=5 // pred_fallthru
      _
    %p124 = scmp.lt.s32.totalorder %s9, 2
    // Predicated region
    $region21: #{temporal_conv.1} parent=5 // pred_check
      %p125 = pneg %p124
    $region22: #{temporal_conv.1} parent=5 // pred_check_branch
      %127 = sbr.rel (%p125) target = $region24
    $region23: #{temporal_conv.1} parent=5 // pred_region
      // Predicated region
      $region25: #{temporal_conv.1} parent=23 // pred_check
        %p128 = pneg %p29
      $region26: #{temporal_conv.1} parent=23 // pred_check_branch
        %130 = sbr.rel (%p128) target = $region28
      $region27: #{temporal_conv.1} parent=23 // pred_region
        %p131 = scmp.lt.s32.totalorder %s9, 1
        %s132 = scalar_select %p131, %s9, 1
        %s133 = smul.addr %s132, 20
        %s134 = smul.addr %s133, 8
        %s135 = scalar_lea.vmem %s0, %s134
      $region28: #{temporal_conv.1} parent=23 // pred_fallthru
        _
    $region24: #{temporal_conv.1} parent=5 // pred_fallthru
      _
    %p136 = scmp.le.s32.totalorder 1, %s9
    %p137 = scmp.lt.s32.totalorder %s9, 3
    %p138 = pnand %p136, %p137
    %p139 = pneg %p138
    // Predicated region
    $region29: #{temporal_conv.1} parent=5 // pred_check
      _
    $region30: #{temporal_conv.1} parent=5 // pred_check_branch
      %141 = sbr.rel (%p138) target = $region32
    $region31: #{temporal_conv.1} parent=5 // pred_region
      %s142 = ssub.s32 %s9, 1
      %p143 = scmp.lt.s32.totalorder %s14, 1
      %s144 = scalar_select %p143, %s14, 1
      %s145 = smul.addr %s144, 20
      %s146 = smul.addr %s145, 8
      %s147 = scalar_lea.vmem %s0, %s146
      %p148 = pneg %p35
      %p149 = pneg %p32
      %p150 = pneg %p56
      %p151 = pneg %p53
      %p152 = pneg %p77
      %p153 = pneg %p74
      %p154 = pneg %p103
      %p155 = pneg %p100
      %p156 = scmp.lt.s32.totalorder %s14, 1
      %s157 = scalar_select %p156, %s14, 1
      %s158 = smul.addr %s157, 16
      %s159 = smul.addr %s158, 8
      %s160 = scalar_lea.vmem %s3, %s159
      %p161 = scmp.lt.s32.totalorder %s14, 1
      %s162 = scalar_select %p161, %s14, 1
      %s163 = smul.addr %s162, 20
      %s164 = smul.addr %s163, 8
      %s165 = scalar_lea.vmem %s0, %s164
      %p166 = scmp.lt.s32.totalorder %s14, 1
      %s167 = scalar_select %p166, %s14, 1
      %s168 = smul.addr %s167, 16
      %s169 = smul.addr %s168, 8
      %s170 = scalar_lea.vmem %s3, %s169
      %v171 = vld [vmem:[%s2] sm:$0x7]
      %v172 = vld [vmem:[%s165] sm:$0xff]
      %v173 = vld [vmem:[%s165 + $0x8] sm:$0xff]
      %v174 = vld [vmem:[%s165 + $0x10] sm:$0xff]
      %v175 = vld [vmem:[%s165 + $0x18] sm:$0xff]
      %v176 = vld [vmem:[%s165 + $0x20] sm:$0xff]
      %v177 = vld [vmem:[%s165 + $0x28] sm:$0xff]
      %v178 = vld [vmem:[%s165 + $0x30] sm:$0xff]
      %v179 = vld [vmem:[%s165 + $0x38] sm:$0xff]
      %v180 = vld [vmem:[%s165 + $0x40] sm:$0xff]
      %v181 = vld [vmem:[%s165 + $0x48] sm:$0xff]
      %v182 = vld [vmem:[%s165 + $0x50] sm:$0xff]
      %v183 = vld [vmem:[%s165 + $0x58] sm:$0xff]
      %v184 = vld [vmem:[%s165 + $0x60] sm:$0xff]
      %v185 = vld [vmem:[%s165 + $0x68] sm:$0xff]
      %v186 = vld [vmem:[%s165 + $0x70] sm:$0xff]
      %v187 = vld [vmem:[%s165 + $0x78] sm:$0xff]
      %v188 = vld [vmem:[%s1] sm:$0xff]
      %v189 = vld [vmem:[%s1 + $0x8] sm:$0xf]
      %v192 = vcombine.high %v188, %v188
      %vm193 = vcmask 31744
      %v195 = vsel %vm193, %v172, 0
      %v198 = vsel %vm193, %v173, 0
      %v201 = vsel %vm193, %v174, 0
      %v204 = vsel %vm193, %v175, 0
      %v207 = vsel %vm193, %v176, 0
      %v210 = vsel %vm193, %v177, 0
      %v213 = vsel %vm193, %v178, 0
      %v216 = vsel %vm193, %v179, 0
      %v219 = vsel %vm193, %v180, 0
      %v222 = vsel %vm193, %v181, 0
      %v225 = vsel %vm193, %v182, 0
      %v228 = vsel %vm193, %v183, 0
      %v231 = vsel %vm193, %v184, 0
      %v234 = vsel %vm193, %v185, 0
      %v237 = vsel %vm193, %v186, 0
      %v240 = vsel %vm193, %v187, 0
      %vm242 = vcmask 1043456
      %v243 = vsel %vm242, %v188, 0
      %v245 = vsel %vm242, %v192, 0
      %v247 = vsel %vm242, %v189, 0
      %249 = vmatprep.subr.mxu0 %v245
      %250 = vmatpush1.msra.mxu0 %v243
      %251 = vmatprep.subr.mxu0 0.0
      %252 = vmatpush1.msra.mxu0 0.0
      %253 = vmatprep.subr.mxu0 0.0
      %254 = vmatpush1.msra.mxu0 0.0
      %255 = vmatprep.subr.mxu0 0.0
      %256 = vmatpush1.msra.mxu0 0.0
      %257 = vmatprep.subr.mxu0 0.0
      %258 = vmatpush1.msra.mxu0 0.0
      %259 = vmatprep.subr.mxu0 0.0
      %260 = vmatpush1.msra.mxu0 0.0
      %261 = vmatprep.subr.mxu0 0.0
      %262 = vmatpush1.msra.mxu0 0.0
      %263 = vmatprep.subr.mxu0 0.0
      %264 = vmatpush1.msra.mxu0 0.0
      %265 = vmatprep.subr.mxu0 0.0
      %266 = vmatpush1.msra.mxu0 0.0
      %267 = vmatprep.subr.mxu0 0.0
      %268 = vmatpush1.msra.mxu0 0.0
      %269 = vmatprep.subr.mxu0 0.0
      %270 = vmatpush1.msra.mxu0 0.0
      %271 = vmatprep.subr.mxu0 0.0
      %272 = vmatpush1.msra.mxu0 0.0
      %273 = vmatprep.subr.mxu0 0.0
      %274 = vmatpush1.msra.mxu0 0.0
      %275 = vmatprep.subr.mxu0 0.0
      %276 = vmatpush1.msra.mxu0 0.0
      %277 = vmatprep.subr.mxu0 0.0
      %278 = vmatpush1.msra.mxu0 0.0
      %279 = vmatprep.subr.mxu0 0.0
      %280 = vmatpush1.msra.mxu0 0.0
      %281 = vmatprep.subr.mxu0 0.0
      %282 = vmatpush1.msra.mxu0 0.0
      %283 = vmatprep.subr.mxu0 0.0
      %284 = vmatpush1.msra.mxu0 0.0
      %285 = vmatprep.subr.mxu0 0.0
      %286 = vmatpush1.msra.mxu0 0.0
      %287 = vmatprep.subr.mxu0 0.0
      %288 = vmatpush1.msra.mxu0 0.0
      %289 = vmatprep.subr.mxu0 0.0
      %290 = vmatpush1.msra.mxu0 0.0
      %291 = vmatprep.subr.mxu0 0.0
      %292 = vmatpush1.msra.mxu0 0.0
      %293 = vmatprep.subr.mxu0 0.0
      %294 = vmatpush1.msra.mxu0 0.0
      %295 = vmatprep.subr.mxu0 0.0
      %296 = vmatpush1.msra.mxu0 0.0
      %297 = vmatprep.subr.mxu0 0.0
      %298 = vmatpush1.msra.mxu0 0.0
      %299 = vmatprep.subr.mxu0 0.0
      %300 = vmatpush1.msra.mxu0 0.0
      %301 = vmatprep.subr.mxu0 0.0
      %302 = vmatpush1.msra.mxu0 0.0
      %303 = vmatprep.subr.mxu0 0.0
      %304 = vmatpush1.msra.mxu0 0.0
      %305 = vmatprep.subr.mxu0 0.0
      %306 = vmatpush1.msra.mxu0 0.0
      %307 = vmatprep.subr.mxu0 0.0
      %308 = vmatpush1.msra.mxu0 0.0
      %309 = vmatprep.subr.mxu0 0.0
      %310 = vmatpush1.msra.mxu0 0.0
      %311 = vmatprep.subr.mxu0 0.0
      %312 = vmatpush1.msra.mxu0 0.0
      %313 = vmatprep.mubr.f32.mxu0 0.0
      %314 = vmatmul.mubr.f32.gmra.mrb[0].mxu0 %v195
      %v315 = vpop.f32.mrb[0].mxu0
      %v316 = vadd.f32 0.0, %v315
      %v317 = vpop.f32.mrb[0].mxu0
      %v318 = vadd.f32 0.0, %v317
      %319 = vmatprep.mubr.f32.mxu0 0.0
      %320 = vmatmul.mubr.f32.gmra.mrb[0].mxu0 %v198
      %v321 = vpop.f32.mrb[0].mxu0
      %v322 = vadd.f32 0.0, %v321
      %v323 = vpop.f32.mrb[0].mxu0
      %v324 = vadd.f32 0.0, %v323
      %325 = vmatprep.mubr.f32.mxu0 0.0
      %326 = vmatmul.mubr.f32.gmra.mrb[0].mxu0 %v201
      %v327 = vpop.f32.mrb[0].mxu0
      %v328 = vadd.f32 0.0, %v327
      %v329 = vpop.f32.mrb[0].mxu0
      %v330 = vadd.f32 0.0, %v329
      %331 = vmatprep.mubr.f32.mxu0 0.0
      %332 = vmatmul.mubr.f32.gmra.mrb[0].mxu0 %v204
      %v333 = vpop.f32.mrb[0].mxu0
      %v334 = vadd.f32 0.0, %v333
      %v335 = vpop.f32.mrb[0].mxu0
      %v336 = vadd.f32 0.0, %v335
      %337 = vmatprep.mubr.f32.mxu0 0.0
      %338 = vmatmul.mubr.f32.gmra.mrb[0].mxu0 %v207
      %v339 = vpop.f32.mrb[0].mxu0
      %v340 = vadd.f32 0.0, %v339
      %v341 = vpop.f32.mrb[0].mxu0
      %v342 = vadd.f32 0.0, %v341
      %343 = vmatprep.mubr.f32.mxu0 0.0
      %344 = vmatmul.mubr.f32.gmra.mrb[0].mxu0 %v210
      %v345 = vpop.f32.mrb[0].mxu0
      %v346 = vadd.f32 0.0, %v345
      %v347 = vpop.f32.mrb[0].mxu0
      %v348 = vadd.f32 0.0, %v347
      %349 = vmatprep.mubr.f32.mxu0 0.0
      %350 = vmatmul.mubr.f32.gmra.mrb[0].mxu0 %v213
      %v351 = vpop.f32.mrb[0].mxu0
      %v352 = vadd.f32 0.0, %v351
      %v353 = vpop.f32.mrb[0].mxu0
      %v354 = vadd.f32 0.0, %v353
      %355 = vmatprep.mubr.f32.mxu0 0.0
      %356 = vmatmul.mubr.f32.gmra.mrb[0].mxu0 %v216
      %v357 = vpop.f32.mrb[0].mxu0
      %v358 = vadd.f32 0.0, %v357
      %v359 = vpop.f32.mrb[0].mxu0
      %v360 = vadd.f32 0.0, %v359
      %361 = vmatprep.mubr.f32.mxu0 0.0
      %362 = vmatmul.mubr.f32.gmra.mrb[0].mxu0 %v219
      %v363 = vpop.f32.mrb[0].mxu0
      %v364 = vadd.f32 0.0, %v363
      %v365 = vpop.f32.mrb[0].mxu0
      %v366 = vadd.f32 0.0, %v365
      %367 = vmatprep.mubr.f32.mxu0 0.0
      %368 = vmatmul.mubr.f32.gmra.mrb[0].mxu0 %v222
      %v369 = vpop.f32.mrb[0].mxu0
      %v370 = vadd.f32 0.0, %v369
      %v371 = vpop.f32.mrb[0].mxu0
      %v372 = vadd.f32 0.0, %v371
      %373 = vmatprep.mubr.f32.mxu0 0.0
      %374 = vmatmul.mubr.f32.gmra.mrb[0].mxu0 %v225
      %v375 = vpop.f32.mrb[0].mxu0
      %v376 = vadd.f32 0.0, %v375
      %v377 = vpop.f32.mrb[0].mxu0
      %v378 = vadd.f32 0.0, %v377
      %379 = vmatprep.mubr.f32.mxu0 0.0
      %380 = vmatmul.mubr.f32.gmra.mrb[0].mxu0 %v228
      %v381 = vpop.f32.mrb[0].mxu0
      %v382 = vadd.f32 0.0, %v381
      %v383 = vpop.f32.mrb[0].mxu0
      %v384 = vadd.f32 0.0, %v383
      %385 = vmatprep.mubr.f32.mxu0 0.0
      %386 = vmatmul.mubr.f32.gmra.mrb[0].mxu0 %v231
      %v387 = vpop.f32.mrb[0].mxu0
      %v388 = vadd.f32 0.0, %v387
      %v389 = vpop.f32.mrb[0].mxu0
      %v390 = vadd.f32 0.0, %v389
      %391 = vmatprep.mubr.f32.mxu0 0.0
      %392 = vmatmul.mubr.f32.gmra.mrb[0].mxu0 %v234
      %v393 = vpop.f32.mrb[0].mxu0
      %v394 = vadd.f32 0.0, %v393
      %v395 = vpop.f32.mrb[0].mxu0
      %v396 = vadd.f32 0.0, %v395
      %397 = vmatprep.mubr.f32.mxu0 0.0
      %398 = vmatmul.mubr.f32.gmra.mrb[0].mxu0 %v237
      %v399 = vpop.f32.mrb[0].mxu0
      %v400 = vadd.f32 0.0, %v399
      %v401 = vpop.f32.mrb[0].mxu0
      %v402 = vadd.f32 0.0, %v401
      %403 = vmatprep.mubr.f32.mxu0 0.0
      %404 = vmatmul.mubr.f32.gmra.mrb[0].mxu0 %v240
      %v405 = vpop.f32.mrb[0].mxu0
      %v406 = vadd.f32 0.0, %v405
      %v407 = vpop.f32.mrb[0].mxu0
      %v408 = vadd.f32 0.0, %v407
      %409 = vdwg.mxu0
      %410 = vmatprep.subr.mxu0 0.0
      %411 = vmatpush1.msra.mxu0 %v247
      %412 = vmatprep.subr.mxu0 0.0
      %413 = vmatpush1.msra.mxu0 0.0
      %414 = vmatprep.subr.mxu0 0.0
      %415 = vmatpush1.msra.mxu0 0.0
      %416 = vmatprep.subr.mxu0 0.0
      %417 = vmatpush1.msra.mxu0 0.0
      %418 = vmatprep.subr.mxu0 0.0
      %419 = vmatpush1.msra.mxu0 0.0
      %420 = vmatprep.subr.mxu0 0.0
      %421 = vmatpush1.msra.mxu0 0.0
      %422 = vmatprep.subr.mxu0 0.0
      %423 = vmatpush1.msra.mxu0 0.0
      %424 = vmatprep.subr.mxu0 0.0
      %425 = vmatpush1.msra.mxu0 0.0
      %426 = vmatprep.subr.mxu0 0.0
      %427 = vmatpush1.msra.mxu0 0.0
      %428 = vmatprep.subr.mxu0 0.0
      %429 = vmatpush1.msra.mxu0 0.0
      %430 = vmatprep.subr.mxu0 0.0
      %431 = vmatpush1.msra.mxu0 0.0
      %432 = vmatprep.subr.mxu0 0.0
      %433 = vmatpush1.msra.mxu0 0.0
      %434 = vmatprep.subr.mxu0 0.0
      %435 = vmatpush1.msra.mxu0 0.0
      %436 = vmatprep.subr.mxu0 0.0
      %437 = vmatpush1.msra.mxu0 0.0
      %438 = vmatprep.subr.mxu0 0.0
      %439 = vmatpush1.msra.mxu0 0.0
      %440 = vmatprep.subr.mxu0 0.0
      %441 = vmatpush1.msra.mxu0 0.0
      %442 = vmatprep.subr.mxu0 0.0
      %443 = vmatpush1.msra.mxu0 0.0
      %444 = vmatprep.subr.mxu0 0.0
      %445 = vmatpush1.msra.mxu0 0.0
      %446 = vmatprep.subr.mxu0 0.0
      %447 = vmatpush1.msra.mxu0 0.0
      %448 = vmatprep.subr.mxu0 0.0
      %449 = vmatpush1.msra.mxu0 0.0
      %450 = vmatprep.subr.mxu0 0.0
      %451 = vmatpush1.msra.mxu0 0.0
      %452 = vmatprep.subr.mxu0 0.0
      %453 = vmatpush1.msra.mxu0 0.0
      %454 = vmatprep.subr.mxu0 0.0
      %455 = vmatpush1.msra.mxu0 0.0
      %456 = vmatprep.subr.mxu0 0.0
      %457 = vmatpush1.msra.mxu0 0.0
      %458 = vmatprep.subr.mxu0 0.0
      %459 = vmatpush1.msra.mxu0 0.0
      %460 = vmatprep.subr.mxu0 0.0
      %461 = vmatpush1.msra.mxu0 0.0
      %462 = vmatprep.subr.mxu0 0.0
      %463 = vmatpush1.msra.mxu0 0.0
      %464 = vmatprep.subr.mxu0 0.0
      %465 = vmatpush1.msra.mxu0 0.0
      %466 = vmatprep.subr.mxu0 0.0
      %467 = vmatpush1.msra.mxu0 0.0
      %468 = vmatprep.subr.mxu0 0.0
      %469 = vmatpush1.msra.mxu0 0.0
      %470 = vmatprep.subr.mxu0 0.0
      %471 = vmatpush1.msra.mxu0 0.0
      %472 = vmatprep.subr.mxu0 0.0
      %473 = vmatpush1.msra.mxu0 0.0
      %474 = vmatprep.mubr.f32.mxu0 0.0
      %475 = vmatmul.mubr.f32.gmra.mrb[0].mxu0 %v195
      %v476 = vpop.f32.mrb[0].mxu0
      %v477 = vadd.f32 0.0, %v476
      %v478 = vpop.f32.mrb[0].mxu0
      %479 = vmatprep.mubr.f32.mxu0 0.0
      %480 = vmatmul.mubr.f32.gmra.mrb[0].mxu0 %v198
      %v481 = vpop.f32.mrb[0].mxu0
      %v482 = vadd.f32 0.0, %v481
      %v483 = vpop.f32.mrb[0].mxu0
      %484 = vmatprep.mubr.f32.mxu0 0.0
      %485 = vmatmul.mubr.f32.gmra.mrb[0].mxu0 %v201
      %v486 = vpop.f32.mrb[0].mxu0
      %v487 = vadd.f32 0.0, %v486
      %v488 = vpop.f32.mrb[0].mxu0
      %489 = vmatprep.mubr.f32.mxu0 0.0
      %490 = vmatmul.mubr.f32.gmra.mrb[0].mxu0 %v204
      %v491 = vpop.f32.mrb[0].mxu0
      %v492 = vadd.f32 0.0, %v491
      %v493 = vpop.f32.mrb[0].mxu0
      %494 = vmatprep.mubr.f32.mxu0 0.0
      %495 = vmatmul.mubr.f32.gmra.mrb[0].mxu0 %v207
      %v496 = vpop.f32.mrb[0].mxu0
      %v497 = vadd.f32 0.0, %v496
      %v498 = vpop.f32.mrb[0].mxu0
      %499 = vmatprep.mubr.f32.mxu0 0.0
      %500 = vmatmul.mubr.f32.gmra.mrb[0].mxu0 %v210
      %v501 = vpop.f32.mrb[0].mxu0
      %v502 = vadd.f32 0.0, %v501
      %v503 = vpop.f32.mrb[0].mxu0
      %504 = vmatprep.mubr.f32.mxu0 0.0
      %505 = vmatmul.mubr.f32.gmra.mrb[0].mxu0 %v213
      %v506 = vpop.f32.mrb[0].mxu0
      %v507 = vadd.f32 0.0, %v506
      %v508 = vpop.f32.mrb[0].mxu0
      %509 = vmatprep.mubr.f32.mxu0 0.0
      %510 = vmatmul.mubr.f32.gmra.mrb[0].mxu0 %v216
      %v511 = vpop.f32.mrb[0].mxu0
      %v512 = vadd.f32 0.0, %v511
      %v513 = vpop.f32.mrb[0].mxu0
      %514 = vmatprep.mubr.f32.mxu0 0.0
      %515 = vmatmul.mubr.f32.gmra.mrb[0].mxu0 %v219
      %v516 = vpop.f32.mrb[0].mxu0
      %v517 = vadd.f32 0.0, %v516
      %v518 = vpop.f32.mrb[0].mxu0
      %519 = vmatprep.mubr.f32.mxu0 0.0
      %520 = vmatmul.mubr.f32.gmra.mrb[0].mxu0 %v222
      %v521 = vpop.f32.mrb[0].mxu0
      %v522 = vadd.f32 0.0, %v521
      %v523 = vpop.f32.mrb[0].mxu0
      %524 = vmatprep.mubr.f32.mxu0 0.0
      %525 = vmatmul.mubr.f32.gmra.mrb[0].mxu0 %v225
      %v526 = vpop.f32.mrb[0].mxu0
      %v527 = vadd.f32 0.0, %v526
      %v528 = vpop.f32.mrb[0].mxu0
      %529 = vmatprep.mubr.f32.mxu0 0.0
      %530 = vmatmul.mubr.f32.gmra.mrb[0].mxu0 %v228
      %v531 = vpop.f32.mrb[0].mxu0
      %v532 = vadd.f32 0.0, %v531
      %v533 = vpop.f32.mrb[0].mxu0
      %534 = vmatprep.mubr.f32.mxu0 0.0
      %535 = vmatmul.mubr.f32.gmra.mrb[0].mxu0 %v231
      %v536 = vpop.f32.mrb[0].mxu0
      %v537 = vadd.f32 0.0, %v536
      %v538 = vpop.f32.mrb[0].mxu0
      %539 = vmatprep.mubr.f32.mxu0 0.0
      %540 = vmatmul.mubr.f32.gmra.mrb[0].mxu0 %v234
      %v541 = vpop.f32.mrb[0].mxu0
      %v542 = vadd.f32 0.0, %v541
      %v543 = vpop.f32.mrb[0].mxu0
      %544 = vmatprep.mubr.f32.mxu0 0.0
      %545 = vmatmul.mubr.f32.gmra.mrb[0].mxu0 %v237
      %v546 = vpop.f32.mrb[0].mxu0
      %v547 = vadd.f32 0.0, %v546
      %v548 = vpop.f32.mrb[0].mxu0
      %549 = vmatprep.mubr.f32.mxu0 0.0
      %550 = vmatmul.mubr.f32.gmra.mrb[0].mxu0 %v240
      %v551 = vpop.f32.mrb[0].mxu0
      %v552 = vadd.f32 0.0, %v551
      %v553 = vpop.f32.mrb[0].mxu0
      %554 = vdwg.mxu0
      %v556 = vlaneseq
      %v557 = vshrl.u32 %v556, 7
      %v558 = vsub.s32 0, %v557
      %v559 = vrot.slane %v171, %v558
      %v560 = vlaneseq
      %v561 = vshrl.u32 %v560, 7
      %v562 = vsub.s32 1, %v561
      %v563 = vrot.slane %v171, %v562
      %v564 = vlaneseq
      %v565 = vshrl.u32 %v564, 7
      %v566 = vsub.s32 2, %v565
      %v567 = vrot.slane %v171, %v566
      %v571 = vadd.f32 %v559, %v316
      %v572 = vadd.f32 %v563, %v318
      %v573 = vadd.f32 %v567, %v477
      %v574 = vadd.f32 %v559, %v322
      %v575 = vadd.f32 %v563, %v324
      %v576 = vadd.f32 %v567, %v482
      %v577 = vadd.f32 %v559, %v328
      %v578 = vadd.f32 %v563, %v330
      %v579 = vadd.f32 %v567, %v487
      %v580 = vadd.f32 %v559, %v334
      %v581 = vadd.f32 %v563, %v336
      %v582 = vadd.f32 %v567, %v492
      %v583 = vadd.f32 %v559, %v340
      %v584 = vadd.f32 %v563, %v342
      %v585 = vadd.f32 %v567, %v497
      %v586 = vadd.f32 %v559, %v346
      %v587 = vadd.f32 %v563, %v348
      %v588 = vadd.f32 %v567, %v502
      %v589 = vadd.f32 %v559, %v352
      %v590 = vadd.f32 %v563, %v354
      %v591 = vadd.f32 %v567, %v507
      %v592 = vadd.f32 %v559, %v358
      %v593 = vadd.f32 %v563, %v360
      %v594 = vadd.f32 %v567, %v512
      %v595 = vadd.f32 %v559, %v364
      %v596 = vadd.f32 %v563, %v366
      %v597 = vadd.f32 %v567, %v517
      %v598 = vadd.f32 %v559, %v370
      %v599 = vadd.f32 %v563, %v372
      %v600 = vadd.f32 %v567, %v522
      %v601 = vadd.f32 %v559, %v376
      %v602 = vadd.f32 %v563, %v378
      %v603 = vadd.f32 %v567, %v527
      %v604 = vadd.f32 %v559, %v382
      %v605 = vadd.f32 %v563, %v384
      %v606 = vadd.f32 %v567, %v532
      %v607 = vadd.f32 %v559, %v388
      %v608 = vadd.f32 %v563, %v390
      %v609 = vadd.f32 %v567, %v537
      %v610 = vadd.f32 %v559, %v394
      %v611 = vadd.f32 %v563, %v396
      %v612 = vadd.f32 %v567, %v542
      %v613 = vadd.f32 %v559, %v400
      %v614 = vadd.f32 %v563, %v402
      %v615 = vadd.f32 %v567, %v547
      %v616 = vadd.f32 %v559, %v406
      %v617 = vadd.f32 %v563, %v408
      %v618 = vadd.f32 %v567, %v552
      %v619 = vld [vmem:[%s165 + $0x10] sm:$0xff]
      %v620 = vld [vmem:[%s165 + $0x18] sm:$0xff]
      %v621 = vld [vmem:[%s165 + $0x20] sm:$0xff]
      %v622 = vld [vmem:[%s165 + $0x28] sm:$0xff]
      %v623 = vld [vmem:[%s165 + $0x30] sm:$0xff]
      %v624 = vld [vmem:[%s165 + $0x38] sm:$0xff]
      %v625 = vld [vmem:[%s165 + $0x40] sm:$0xff]
      %v626 = vld [vmem:[%s165 + $0x48] sm:$0xff]
      %v627 = vld [vmem:[%s165 + $0x50] sm:$0xff]
      %v628 = vld [vmem:[%s165 + $0x58] sm:$0xff]
      %v629 = vld [vmem:[%s165 + $0x60] sm:$0xff]
      %v630 = vld [vmem:[%s165 + $0x68] sm:$0xff]
      %v631 = vld [vmem:[%s165 + $0x70] sm:$0xff]
      %v632 = vld [vmem:[%s165 + $0x78] sm:$0xff]
      %v633 = vld [vmem:[%s165 + $0x80] sm:$0xff]
      %v634 = vld [vmem:[%s165 + $0x88] sm:$0xff]
      %s635 = scalar_lea.vmem %s1, 12
      %v636 = vld [vmem:[%s635] sm:$0xff]
      %v637 = vld [vmem:[%s635 + $0x8] sm:$0xf]
      %v640 = vcombine.high %v636, %v636
      %v642 = vsel %vm193, %v619, 0
      %v645 = vsel %vm193, %v620, 0
      %v648 = vsel %vm193, %v621, 0
      %v651 = vsel %vm193, %v622, 0
      %v654 = vsel %vm193, %v623, 0
      %v657 = vsel %vm193, %v624, 0
      %v660 = vsel %vm193, %v625, 0
      %v663 = vsel %vm193, %v626, 0
      %v666 = vsel %vm193, %v627, 0
      %v669 = vsel %vm193, %v628, 0
      %v672 = vsel %vm193, %v629, 0
      %v675 = vsel %vm193, %v630, 0
      %v678 = vsel %vm193, %v631, 0
      %v681 = vsel %vm193, %v632, 0
      %v684 = vsel %vm193, %v633, 0
      %v687 = vsel %vm193, %v634, 0
      %v689 = vsel %vm242, %v636, 0
      %v691 = vsel %vm242, %v640, 0
      %v693 = vsel %vm242, %v637, 0
      %695 = vmatprep.subr.mxu0 %v691
      %696 = vmatpush1.msra.mxu0 %v689
      %697 = vmatprep.subr.mxu0 0.0
      %698 = vmatpush1.msra.mxu0 0.0
      %699 = vmatprep.subr.mxu0 0.0
      %700 = vmatpush1.msra.mxu0 0.0
      %701 = vmatprep.subr.mxu0 0.0
      %702 = vmatpush1.msra.mxu0 0.0
      %703 = vmatprep.subr.mxu0 0.0
      %704 = vmatpush1.msra.mxu0 0.0
      %705 = vmatprep.subr.mxu0 0.0
      %706 = vmatpush1.msra.mxu0 0.0
      %707 = vmatprep.subr.mxu0 0.0
      %708 = vmatpush1.msra.mxu0 0.0
      %709 = vmatprep.subr.mxu0 0.0
      %710 = vmatpush1.msra.mxu0 0.0
      %711 = vmatprep.subr.mxu0 0.0
      %712 = vmatpush1.msra.mxu0 0.0
      %713 = vmatprep.subr.mxu0 0.0
      %714 = vmatpush1.msra.mxu0 0.0
      %715 = vmatprep.subr.mxu0 0.0
      %716 = vmatpush1.msra.mxu0 0.0
      %717 = vmatprep.subr.mxu0 0.0
      %718 = vmatpush1.msra.mxu0 0.0
      %719 = vmatprep.subr.mxu0 0.0
      %720 = vmatpush1.msra.mxu0 0.0
      %721 = vmatprep.subr.mxu0 0.0
      %722 = vmatpush1.msra.mxu0 0.0
      %723 = vmatprep.subr.mxu0 0.0
      %724 = vmatpush1.msra.mxu0 0.0
      %725 = vmatprep.subr.mxu0 0.0
      %726 = vmatpush1.msra.mxu0 0.0
      %727 = vmatprep.subr.mxu0 0.0
      %728 = vmatpush1.msra.mxu0 0.0
      %729 = vmatprep.subr.mxu0 0.0
      %730 = vmatpush1.msra.mxu0 0.0
      %731 = vmatprep.subr.mxu0 0.0
      %732 = vmatpush1.msra.mxu0 0.0
      %733 = vmatprep.subr.mxu0 0.0
      %734 = vmatpush1.msra.mxu0 0.0
      %735 = vmatprep.subr.mxu0 0.0
      %736 = vmatpush1.msra.mxu0 0.0
      %737 = vmatprep.subr.mxu0 0.0
      %738 = vmatpush1.msra.mxu0 0.0
      %739 = vmatprep.subr.mxu0 0.0
      %740 = vmatpush1.msra.mxu0 0.0
      %741 = vmatprep.subr.mxu0 0.0
      %742 = vmatpush1.msra.mxu0 0.0
      %743 = vmatprep.subr.mxu0 0.0
      %744 = vmatpush1.msra.mxu0 0.0
      %745 = vmatprep.subr.mxu0 0.0
      %746 = vmatpush1.msra.mxu0 0.0
      %747 = vmatprep.subr.mxu0 0.0
      %748 = vmatpush1.msra.mxu0 0.0
      %749 = vmatprep.subr.mxu0 0.0
      %750 = vmatpush1.msra.mxu0 0.0
      %751 = vmatprep.subr.mxu0 0.0
      %752 = vmatpush1.msra.mxu0 0.0
      %753 = vmatprep.subr.mxu0 0.0
      %754 = vmatpush1.msra.mxu0 0.0
      %755 = vmatprep.subr.mxu0 0.0
      %756 = vmatpush1.msra.mxu0 0.0
      %757 = vmatprep.subr.mxu0 0.0
      %758 = vmatpush1.msra.mxu0 0.0
      %759 = vmatprep.mubr.f32.mxu0 0.0
      %760 = vmatmul.mubr.f32.gmra.mrb[0].mxu0 %v642
      %v761 = vpop.f32.mrb[0].mxu0
      %v762 = vadd.f32 0.0, %v761
      %v763 = vpop.f32.mrb[0].mxu0
      %v764 = vadd.f32 0.0, %v763
      %765 = vmatprep.mubr.f32.mxu0 0.0
      %766 = vmatmul.mubr.f32.gmra.mrb[0].mxu0 %v645
      %v767 = vpop.f32.mrb[0].mxu0
      %v768 = vadd.f32 0.0, %v767
      %v769 = vpop.f32.mrb[0].mxu0
      %v770 = vadd.f32 0.0, %v769
      %771 = vmatprep.mubr.f32.mxu0 0.0
      %772 = vmatmul.mubr.f32.gmra.mrb[0].mxu0 %v648
      %v773 = vpop.f32.mrb[0].mxu0
      %v774 = vadd.f32 0.0, %v773
      %v775 = vpop.f32.mrb[0].mxu0
      %v776 = vadd.f32 0.0, %v775
      %777 = vmatprep.mubr.f32.mxu0 0.0
      %778 = vmatmul.mubr.f32.gmra.mrb[0].mxu0 %v651
      %v779 = vpop.f32.mrb[0].mxu0
      %v780 = vadd.f32 0.0, %v779
      %v781 = vpop.f32.mrb[0].mxu0
      %v782 = vadd.f32 0.0, %v781
      %783 = vmatprep.mubr.f32.mxu0 0.0
      %784 = vmatmul.mubr.f32.gmra.mrb[0].mxu0 %v654
      %v785 = vpop.f32.mrb[0].mxu0
      %v786 = vadd.f32 0.0, %v785
      %v787 = vpop.f32.mrb[0].mxu0
      %v788 = vadd.f32 0.0, %v787
      %789 = vmatprep.mubr.f32.mxu0 0.0
      %790 = vmatmul.mubr.f32.gmra.mrb[0].mxu0 %v657
      %v791 = vpop.f32.mrb[0].mxu0
      %v792 = vadd.f32 0.0, %v791
      %v793 = vpop.f32.mrb[0].mxu0
      %v794 = vadd.f32 0.0, %v793
      %795 = vmatprep.mubr.f32.mxu0 0.0
      %796 = vmatmul.mubr.f32.gmra.mrb[0].mxu0 %v660
      %v797 = vpop.f32.mrb[0].mxu0
      %v798 = vadd.f32 0.0, %v797
      %v799 = vpop.f32.mrb[0].mxu0
      %v800 = vadd.f32 0.0, %v799
      %801 = vmatprep.mubr.f32.mxu0 0.0
      %802 = vmatmul.mubr.f32.gmra.mrb[0].mxu0 %v663
      %v803 = vpop.f32.mrb[0].mxu0
      %v804 = vadd.f32 0.0, %v803
      %v805 = vpop.f32.mrb[0].mxu0
      %v806 = vadd.f32 0.0, %v805
      %807 = vmatprep.mubr.f32.mxu0 0.0
      %808 = vmatmul.mubr.f32.gmra.mrb[0].mxu0 %v666
      %v809 = vpop.f32.mrb[0].mxu0
      %v810 = vadd.f32 0.0, %v809
      %v811 = vpop.f32.mrb[0].mxu0
      %v812 = vadd.f32 0.0, %v811
      %813 = vmatprep.mubr.f32.mxu0 0.0
      %814 = vmatmul.mubr.f32.gmra.mrb[0].mxu0 %v669
      %v815 = vpop.f32.mrb[0].mxu0
      %v816 = vadd.f32 0.0, %v815
      %v817 = vpop.f32.mrb[0].mxu0
      %v818 = vadd.f32 0.0, %v817
      %819 = vmatprep.mubr.f32.mxu0 0.0
      %820 = vmatmul.mubr.f32.gmra.mrb[0].mxu0 %v672
      %v821 = vpop.f32.mrb[0].mxu0
      %v822 = vadd.f32 0.0, %v821
      %v823 = vpop.f32.mrb[0].mxu0
      %v824 = vadd.f32 0.0, %v823
      %825 = vmatprep.mubr.f32.mxu0 0.0
      %826 = vmatmul.mubr.f32.gmra.mrb[0].mxu0 %v675
      %v827 = vpop.f32.mrb[0].mxu0
      %v828 = vadd.f32 0.0, %v827
      %v829 = vpop.f32.mrb[0].mxu0
      %v830 = vadd.f32 0.0, %v829
      %831 = vmatprep.mubr.f32.mxu0 0.0
      %832 = vmatmul.mubr.f32.gmra.mrb[0].mxu0 %v678
      %v833 = vpop.f32.mrb[0].mxu0
      %v834 = vadd.f32 0.0, %v833
      %v835 = vpop.f32.mrb[0].mxu0
      %v836 = vadd.f32 0.0, %v835
      %837 = vmatprep.mubr.f32.mxu0 0.0
      %838 = vmatmul.mubr.f32.gmra.mrb[0].mxu0 %v681
      %v839 = vpop.f32.mrb[0].mxu0
      %v840 = vadd.f32 0.0, %v839
      %v841 = vpop.f32.mrb[0].mxu0
      %v842 = vadd.f32 0.0, %v841
      %843 = vmatprep.mubr.f32.mxu0 0.0
      %844 = vmatmul.mubr.f32.gmra.mrb[0].mxu0 %v684
      %v845 = vpop.f32.mrb[0].mxu0
      %v846 = vadd.f32 0.0, %v845
      %v847 = vpop.f32.mrb[0].mxu0
      %v848 = vadd.f32 0.0, %v847
      %849 = vmatprep.mubr.f32.mxu0 0.0
      %850 = vmatmul.mubr.f32.gmra.mrb[0].mxu0 %v687
      %v851 = vpop.f32.mrb[0].mxu0
      %v852 = vadd.f32 0.0, %v851
      %v853 = vpop.f32.mrb[0].mxu0
      %v854 = vadd.f32 0.0, %v853
      %855 = vdwg.mxu0
      %856 = vmatprep.subr.mxu0 0.0
      %857 = vmatpush1.msra.mxu0 %v693
      %858 = vmatprep.subr.mxu0 0.0
      %859 = vmatpush1.msra.mxu0 0.0
      %860 = vmatprep.subr.mxu0 0.0
      %861 = vmatpush1.msra.mxu0 0.0
      %862 = vmatprep.subr.mxu0 0.0
      %863 = vmatpush1.msra.mxu0 0.0
      %864 = vmatprep.subr.mxu0 0.0
      %865 = vmatpush1.msra.mxu0 0.0
      %866 = vmatprep.subr.mxu0 0.0
      %867 = vmatpush1.msra.mxu0 0.0
      %868 = vmatprep.subr.mxu0 0.0
      %869 = vmatpush1.msra.mxu0 0.0
      %870 = vmatprep.subr.mxu0 0.0
      %871 = vmatpush1.msra.mxu0 0.0
      %872 = vmatprep.subr.mxu0 0.0
      %873 = vmatpush1.msra.mxu0 0.0
      %874 = vmatprep.subr.mxu0 0.0
      %875 = vmatpush1.msra.mxu0 0.0
      %876 = vmatprep.subr.mxu0 0.0
      %877 = vmatpush1.msra.mxu0 0.0
      %878 = vmatprep.subr.mxu0 0.0
      %879 = vmatpush1.msra.mxu0 0.0
      %880 = vmatprep.subr.mxu0 0.0
      %881 = vmatpush1.msra.mxu0 0.0
      %882 = vmatprep.subr.mxu0 0.0
      %883 = vmatpush1.msra.mxu0 0.0
      %884 = vmatprep.subr.mxu0 0.0
      %885 = vmatpush1.msra.mxu0 0.0
      %886 = vmatprep.subr.mxu0 0.0
      %887 = vmatpush1.msra.mxu0 0.0
      %888 = vmatprep.subr.mxu0 0.0
      %889 = vmatpush1.msra.mxu0 0.0
      %890 = vmatprep.subr.mxu0 0.0
      %891 = vmatpush1.msra.mxu0 0.0
      %892 = vmatprep.subr.mxu0 0.0
      %893 = vmatpush1.msra.mxu0 0.0
      %894 = vmatprep.subr.mxu0 0.0
      %895 = vmatpush1.msra.mxu0 0.0
      %896 = vmatprep.subr.mxu0 0.0
      %897 = vmatpush1.msra.mxu0 0.0
      %898 = vmatprep.subr.mxu0 0.0
      %899 = vmatpush1.msra.mxu0 0.0
      %900 = vmatprep.subr.mxu0 0.0
      %901 = vmatpush1.msra.mxu0 0.0
      %902 = vmatprep.subr.mxu0 0.0
      %903 = vmatpush1.msra.mxu0 0.0
      %904 = vmatprep.subr.mxu0 0.0
      %905 = vmatpush1.msra.mxu0 0.0
      %906 = vmatprep.subr.mxu0 0.0
      %907 = vmatpush1.msra.mxu0 0.0
      %908 = vmatprep.subr.mxu0 0.0
      %909 = vmatpush1.msra.mxu0 0.0
      %910 = vmatprep.subr.mxu0 0.0
      %911 = vmatpush1.msra.mxu0 0.0
      %912 = vmatprep.subr.mxu0 0.0
      %913 = vmatpush1.msra.mxu0 0.0
      %914 = vmatprep.subr.mxu0 0.0
      %915 = vmatpush1.msra.mxu0 0.0
      %916 = vmatprep.subr.mxu0 0.0
      %917 = vmatpush1.msra.mxu0 0.0
      %918 = vmatprep.subr.mxu0 0.0
      %919 = vmatpush1.msra.mxu0 0.0
      %920 = vmatprep.mubr.f32.mxu0 0.0
      %921 = vmatmul.mubr.f32.gmra.mrb[0].mxu0 %v642
      %v922 = vpop.f32.mrb[0].mxu0
      %v923 = vadd.f32 0.0, %v922
      %v924 = vpop.f32.mrb[0].mxu0
      %925 = vmatprep.mubr.f32.mxu0 0.0
      %926 = vmatmul.mubr.f32.gmra.mrb[0].mxu0 %v645
      %v927 = vpop.f32.mrb[0].mxu0
      %v928 = vadd.f32 0.0, %v927
      %v929 = vpop.f32.mrb[0].mxu0
      %930 = vmatprep.mubr.f32.mxu0 0.0
      %931 = vmatmul.mubr.f32.gmra.mrb[0].mxu0 %v648
      %v932 = vpop.f32.mrb[0].mxu0
      %v933 = vadd.f32 0.0, %v932
      %v934 = vpop.f32.mrb[0].mxu0
      %935 = vmatprep.mubr.f32.mxu0 0.0
      %936 = vmatmul.mubr.f32.gmra.mrb[0].mxu0 %v651
      %v937 = vpop.f32.mrb[0].mxu0
      %v938 = vadd.f32 0.0, %v937
      %v939 = vpop.f32.mrb[0].mxu0
      %940 = vmatprep.mubr.f32.mxu0 0.0
      %941 = vmatmul.mubr.f32.gmra.mrb[0].mxu0 %v654
      %v942 = vpop.f32.mrb[0].mxu0
      %v943 = vadd.f32 0.0, %v942
      %v944 = vpop.f32.mrb[0].mxu0
      %945 = vmatprep.mubr.f32.mxu0 0.0
      %946 = vmatmul.mubr.f32.gmra.mrb[0].mxu0 %v657
      %v947 = vpop.f32.mrb[0].mxu0
      %v948 = vadd.f32 0.0, %v947
      %v949 = vpop.f32.mrb[0].mxu0
      %950 = vmatprep.mubr.f32.mxu0 0.0
      %951 = vmatmul.mubr.f32.gmra.mrb[0].mxu0 %v660
      %v952 = vpop.f32.mrb[0].mxu0
      %v953 = vadd.f32 0.0, %v952
      %v954 = vpop.f32.mrb[0].mxu0
      %955 = vmatprep.mubr.f32.mxu0 0.0
      %956 = vmatmul.mubr.f32.gmra.mrb[0].mxu0 %v663
      %v957 = vpop.f32.mrb[0].mxu0
      %v958 = vadd.f32 0.0, %v957
      %v959 = vpop.f32.mrb[0].mxu0
      %960 = vmatprep.mubr.f32.mxu0 0.0
      %961 = vmatmul.mubr.f32.gmra.mrb[0].mxu0 %v666
      %v962 = vpop.f32.mrb[0].mxu0
      %v963 = vadd.f32 0.0, %v962
      %v964 = vpop.f32.mrb[0].mxu0
      %965 = vmatprep.mubr.f32.mxu0 0.0
      %966 = vmatmul.mubr.f32.gmra.mrb[0].mxu0 %v669
      %v967 = vpop.f32.mrb[0].mxu0
      %v968 = vadd.f32 0.0, %v967
      %v969 = vpop.f32.mrb[0].mxu0
      %970 = vmatprep.mubr.f32.mxu0 0.0
      %971 = vmatmul.mubr.f32.gmra.mrb[0].mxu0 %v672
      %v972 = vpop.f32.mrb[0].mxu0
      %v973 = vadd.f32 0.0, %v972
      %v974 = vpop.f32.mrb[0].mxu0
      %975 = vmatprep.mubr.f32.mxu0 0.0
      %976 = vmatmul.mubr.f32.gmra.mrb[0].mxu0 %v675
      %v977 = vpop.f32.mrb[0].mxu0
      %v978 = vadd.f32 0.0, %v977
      %v979 = vpop.f32.mrb[0].mxu0
      %980 = vmatprep.mubr.f32.mxu0 0.0
      %981 = vmatmul.mubr.f32.gmra.mrb[0].mxu0 %v678
      %v982 = vpop.f32.mrb[0].mxu0
      %v983 = vadd.f32 0.0, %v982
      %v984 = vpop.f32.mrb[0].mxu0
      %985 = vmatprep.mubr.f32.mxu0 0.0
      %986 = vmatmul.mubr.f32.gmra.mrb[0].mxu0 %v681
      %v987 = vpop.f32.mrb[0].mxu0
      %v988 = vadd.f32 0.0, %v987
      %v989 = vpop.f32.mrb[0].mxu0
      %990 = vmatprep.mubr.f32.mxu0 0.0
      %991 = vmatmul.mubr.f32.gmra.mrb[0].mxu0 %v684
      %v992 = vpop.f32.mrb[0].mxu0
      %v993 = vadd.f32 0.0, %v992
      %v994 = vpop.f32.mrb[0].mxu0
      %995 = vmatprep.mubr.f32.mxu0 0.0
      %996 = vmatmul.mubr.f32.gmra.mrb[0].mxu0 %v687
      %v997 = vpop.f32.mrb[0].mxu0
      %v998 = vadd.f32 0.0, %v997
      %v999 = vpop.f32.mrb[0].mxu0
      %1000 = vdwg.mxu0
      %v1001 = vadd.f32 %v571, %v762
      %v1002 = vadd.f32 %v572, %v764
      %v1003 = vadd.f32 %v573, %v923
      %v1004 = vadd.f32 %v574, %v768
      %v1005 = vadd.f32 %v575, %v770
      %v1006 = vadd.f32 %v576, %v928
      %v1007 = vadd.f32 %v577, %v774
      %v1008 = vadd.f32 %v578, %v776
      %v1009 = vadd.f32 %v579, %v933
      %v1010 = vadd.f32 %v580, %v780
      %v1011 = vadd.f32 %v581, %v782
      %v1012 = vadd.f32 %v582, %v938
      %v1013 = vadd.f32 %v583, %v786
      %v1014 = vadd.f32 %v584, %v788
      %v1015 = vadd.f32 %v585, %v943
      %v1016 = vadd.f32 %v586, %v792
      %v1017 = vadd.f32 %v587, %v794
      %v1018 = vadd.f32 %v588, %v948
      %v1019 = vadd.f32 %v589, %v798
      %v1020 = vadd.f32 %v590, %v800
      %v1021 = vadd.f32 %v591, %v953
      %v1022 = vadd.f32 %v592, %v804
      %v1023 = vadd.f32 %v593, %v806
      %v1024 = vadd.f32 %v594, %v958
      %v1025 = vadd.f32 %v595, %v810
      %v1026 = vadd.f32 %v596, %v812
      %v1027 = vadd.f32 %v597, %v963
      %v1028 = vadd.f32 %v598, %v816
      %v1029 = vadd.f32 %v599, %v818
      %v1030 = vadd.f32 %v600, %v968
      %v1031 = vadd.f32 %v601, %v822
      %v1032 = vadd.f32 %v602, %v824
      %v1033 = vadd.f32 %v603, %v973
      %v1034 = vadd.f32 %v604, %v828
      %v1035 = vadd.f32 %v605, %v830
      %v1036 = vadd.f32 %v606, %v978
      %v1037 = vadd.f32 %v607, %v834
      %v1038 = vadd.f32 %v608, %v836
      %v1039 = vadd.f32 %v609, %v983
      %v1040 = vadd.f32 %v610, %v840
      %v1041 = vadd.f32 %v611, %v842
      %v1042 = vadd.f32 %v612, %v988
      %v1043 = vadd.f32 %v613, %v846
      %v1044 = vadd.f32 %v614, %v848
      %v1045 = vadd.f32 %v615, %v993
      %v1046 = vadd.f32 %v616, %v852
      %v1047 = vadd.f32 %v617, %v854
      %v1048 = vadd.f32 %v618, %v998
      %v1049 = vld [vmem:[%s165 + $0x20] sm:$0xff]
      %v1050 = vld [vmem:[%s165 + $0x28] sm:$0xff]
      %v1051 = vld [vmem:[%s165 + $0x30] sm:$0xff]
      %v1052 = vld [vmem:[%s165 + $0x38] sm:$0xff]
      %v1053 = vld [vmem:[%s165 + $0x40] sm:$0xff]
      %v1054 = vld [vmem:[%s165 + $0x48] sm:$0xff]
      %v1055 = vld [vmem:[%s165 + $0x50] sm:$0xff]
      %v1056 = vld [vmem:[%s165 + $0x58] sm:$0xff]
      %v1057 = vld [vmem:[%s165 + $0x60] sm:$0xff]
      %v1058 = vld [vmem:[%s165 + $0x68] sm:$0xff]
      %v1059 = vld [vmem:[%s165 + $0x70] sm:$0xff]
      %v1060 = vld [vmem:[%s165 + $0x78] sm:$0xff]
      %v1061 = vld [vmem:[%s165 + $0x80] sm:$0xff]
      %v1062 = vld [vmem:[%s165 + $0x88] sm:$0xff]
      %v1063 = vld [vmem:[%s165 + $0x90] sm:$0xff]
      %v1064 = vld [vmem:[%s165 + $0x98] sm:$0xff]
      %s1065 = scalar_lea.vmem %s1, 24
      %v1066 = vld [vmem:[%s1065] sm:$0xff]
      %v1067 = vld [vmem:[%s1065 + $0x8] sm:$0xf]
      %v1070 = vcombine.high %v1066, %v1066
      %v1072 = vsel %vm193, %v1049, 0
      %v1075 = vsel %vm193, %v1050, 0
      %v1078 = vsel %vm193, %v1051, 0
      %v1081 = vsel %vm193, %v1052, 0
      %v1084 = vsel %vm193, %v1053, 0
      %v1087 = vsel %vm193, %v1054, 0
      %v1090 = vsel %vm193, %v1055, 0
      %v1093 = vsel %vm193, %v1056, 0
      %v1096 = vsel %vm193, %v1057, 0
      %v1099 = vsel %vm193, %v1058, 0
      %v1102 = vsel %vm193, %v1059, 0
      %v1105 = vsel %vm193, %v1060, 0
      %v1108 = vsel %vm193, %v1061, 0
      %v1111 = vsel %vm193, %v1062, 0
      %v1114 = vsel %vm193, %v1063, 0
      %v1117 = vsel %vm193, %v1064, 0
      %v1119 = vsel %vm242, %v1066, 0
      %v1121 = vsel %vm242, %v1070, 0
      %v1123 = vsel %vm242, %v1067, 0
      %1125 = vmatprep.subr.mxu0 %v1121
      %1126 = vmatpush1.msra.mxu0 %v1119
      %1127 = vmatprep.subr.mxu0 0.0
      %1128 = vmatpush1.msra.mxu0 0.0
      %1129 = vmatprep.subr.mxu0 0.0
      %1130 = vmatpush1.msra.mxu0 0.0
      %1131 = vmatprep.subr.mxu0 0.0
      %1132 = vmatpush1.msra.mxu0 0.0
      %1133 = vmatprep.subr.mxu0 0.0
      %1134 = vmatpush1.msra.mxu0 0.0
      %1135 = vmatprep.subr.mxu0 0.0
      %1136 = vmatpush1.msra.mxu0 0.0
      %1137 = vmatprep.subr.mxu0 0.0
      %1138 = vmatpush1.msra.mxu0 0.0
      %1139 = vmatprep.subr.mxu0 0.0
      %1140 = vmatpush1.msra.mxu0 0.0
      %1141 = vmatprep.subr.mxu0 0.0
      %1142 = vmatpush1.msra.mxu0 0.0
      %1143 = vmatprep.subr.mxu0 0.0
      %1144 = vmatpush1.msra.mxu0 0.0
      %1145 = vmatprep.subr.mxu0 0.0
      %1146 = vmatpush1.msra.mxu0 0.0
      %1147 = vmatprep.subr.mxu0 0.0
      %1148 = vmatpush1.msra.mxu0 0.0
      %1149 = vmatprep.subr.mxu0 0.0
      %1150 = vmatpush1.msra.mxu0 0.0
      %1151 = vmatprep.subr.mxu0 0.0
      %1152 = vmatpush1.msra.mxu0 0.0
      %1153 = vmatprep.subr.mxu0 0.0
      %1154 = vmatpush1.msra.mxu0 0.0
      %1155 = vmatprep.subr.mxu0 0.0
      %1156 = vmatpush1.msra.mxu0 0.0
      %1157 = vmatprep.subr.mxu0 0.0
      %1158 = vmatpush1.msra.mxu0 0.0
      %1159 = vmatprep.subr.mxu0 0.0
      %1160 = vmatpush1.msra.mxu0 0.0
      %1161 = vmatprep.subr.mxu0 0.0
      %1162 = vmatpush1.msra.mxu0 0.0
      %1163 = vmatprep.subr.mxu0 0.0
      %1164 = vmatpush1.msra.mxu0 0.0
      %1165 = vmatprep.subr.mxu0 0.0
      %1166 = vmatpush1.msra.mxu0 0.0
      %1167 = vmatprep.subr.mxu0 0.0
      %1168 = vmatpush1.msra.mxu0 0.0
      %1169 = vmatprep.subr.mxu0 0.0
      %1170 = vmatpush1.msra.mxu0 0.0
      %1171 = vmatprep.subr.mxu0 0.0
      %1172 = vmatpush1.msra.mxu0 0.0
      %1173 = vmatprep.subr.mxu0 0.0
      %1174 = vmatpush1.msra.mxu0 0.0
      %1175 = vmatprep.subr.mxu0 0.0
      %1176 = vmatpush1.msra.mxu0 0.0
      %1177 = vmatprep.subr.mxu0 0.0
      %1178 = vmatpush1.msra.mxu0 0.0
      %1179 = vmatprep.subr.mxu0 0.0
      %1180 = vmatpush1.msra.mxu0 0.0
      %1181 = vmatprep.subr.mxu0 0.0
      %1182 = vmatpush1.msra.mxu0 0.0
      %1183 = vmatprep.subr.mxu0 0.0
      %1184 = vmatpush1.msra.mxu0 0.0
      %1185 = vmatprep.subr.mxu0 0.0
      %1186 = vmatpush1.msra.mxu0 0.0
      %1187 = vmatprep.subr.mxu0 0.0
      %1188 = vmatpush1.msra.mxu0 0.0
      %1189 = vmatprep.mubr.f32.mxu0 0.0
      %1190 = vmatmul.mubr.f32.gmra.mrb[0].mxu0 %v1072
      %v1191 = vpop.f32.mrb[0].mxu0
      %v1192 = vadd.f32 0.0, %v1191
      %v1193 = vpop.f32.mrb[0].mxu0
      %v1194 = vadd.f32 0.0, %v1193
      %1195 = vmatprep.mubr.f32.mxu0 0.0
      %1196 = vmatmul.mubr.f32.gmra.mrb[0].mxu0 %v1075
      %v1197 = vpop.f32.mrb[0].mxu0
      %v1198 = vadd.f32 0.0, %v1197
      %v1199 = vpop.f32.mrb[0].mxu0
      %v1200 = vadd.f32 0.0, %v1199
      %1201 = vmatprep.mubr.f32.mxu0 0.0
      %1202 = vmatmul.mubr.f32.gmra.mrb[0].mxu0 %v1078
      %v1203 = vpop.f32.mrb[0].mxu0
      %v1204 = vadd.f32 0.0, %v1203
      %v1205 = vpop.f32.mrb[0].mxu0
      %v1206 = vadd.f32 0.0, %v1205
      %1207 = vmatprep.mubr.f32.mxu0 0.0
      %1208 = vmatmul.mubr.f32.gmra.mrb[0].mxu0 %v1081
      %v1209 = vpop.f32.mrb[0].mxu0
      %v1210 = vadd.f32 0.0, %v1209
      %v1211 = vpop.f32.mrb[0].mxu0
      %v1212 = vadd.f32 0.0, %v1211
      %1213 = vmatprep.mubr.f32.mxu0 0.0
      %1214 = vmatmul.mubr.f32.gmra.mrb[0].mxu0 %v1084
      %v1215 = vpop.f32.mrb[0].mxu0
      %v1216 = vadd.f32 0.0, %v1215
      %v1217 = vpop.f32.mrb[0].mxu0
      %v1218 = vadd.f32 0.0, %v1217
      %1219 = vmatprep.mubr.f32.mxu0 0.0
      %1220 = vmatmul.mubr.f32.gmra.mrb[0].mxu0 %v1087
      %v1221 = vpop.f32.mrb[0].mxu0
      %v1222 = vadd.f32 0.0, %v1221
      %v1223 = vpop.f32.mrb[0].mxu0
      %v1224 = vadd.f32 0.0, %v1223
      %1225 = vmatprep.mubr.f32.mxu0 0.0
      %1226 = vmatmul.mubr.f32.gmra.mrb[0].mxu0 %v1090
      %v1227 = vpop.f32.mrb[0].mxu0
      %v1228 = vadd.f32 0.0, %v1227
      %v1229 = vpop.f32.mrb[0].mxu0
      %v1230 = vadd.f32 0.0, %v1229
      %1231 = vmatprep.mubr.f32.mxu0 0.0
      %1232 = vmatmul.mubr.f32.gmra.mrb[0].mxu0 %v1093
      %v1233 = vpop.f32.mrb[0].mxu0
      %v1234 = vadd.f32 0.0, %v1233
      %v1235 = vpop.f32.mrb[0].mxu0
      %v1236 = vadd.f32 0.0, %v1235
      %1237 = vmatprep.mubr.f32.mxu0 0.0
      %1238 = vmatmul.mubr.f32.gmra.mrb[0].mxu0 %v1096
      %v1239 = vpop.f32.mrb[0].mxu0
      %v1240 = vadd.f32 0.0, %v1239
      %v1241 = vpop.f32.mrb[0].mxu0
      %v1242 = vadd.f32 0.0, %v1241
      %1243 = vmatprep.mubr.f32.mxu0 0.0
      %1244 = vmatmul.mubr.f32.gmra.mrb[0].mxu0 %v1099
      %v1245 = vpop.f32.mrb[0].mxu0
      %v1246 = vadd.f32 0.0, %v1245
      %v1247 = vpop.f32.mrb[0].mxu0
      %v1248 = vadd.f32 0.0, %v1247
      %1249 = vmatprep.mubr.f32.mxu0 0.0
      %1250 = vmatmul.mubr.f32.gmra.mrb[0].mxu0 %v1102
      %v1251 = vpop.f32.mrb[0].mxu0
      %v1252 = vadd.f32 0.0, %v1251
      %v1253 = vpop.f32.mrb[0].mxu0
      %v1254 = vadd.f32 0.0, %v1253
      %1255 = vmatprep.mubr.f32.mxu0 0.0
      %1256 = vmatmul.mubr.f32.gmra.mrb[0].mxu0 %v1105
      %v1257 = vpop.f32.mrb[0].mxu0
      %v1258 = vadd.f32 0.0, %v1257
      %v1259 = vpop.f32.mrb[0].mxu0
      %v1260 = vadd.f32 0.0, %v1259
      %1261 = vmatprep.mubr.f32.mxu0 0.0
      %1262 = vmatmul.mubr.f32.gmra.mrb[0].mxu0 %v1108
      %v1263 = vpop.f32.mrb[0].mxu0
      %v1264 = vadd.f32 0.0, %v1263
      %v1265 = vpop.f32.mrb[0].mxu0
      %v1266 = vadd.f32 0.0, %v1265
      %1267 = vmatprep.mubr.f32.mxu0 0.0
      %1268 = vmatmul.mubr.f32.gmra.mrb[0].mxu0 %v1111
      %v1269 = vpop.f32.mrb[0].mxu0
      %v1270 = vadd.f32 0.0, %v1269
      %v1271 = vpop.f32.mrb[0].mxu0
      %v1272 = vadd.f32 0.0, %v1271
      %1273 = vmatprep.mubr.f32.mxu0 0.0
      %1274 = vmatmul.mubr.f32.gmra.mrb[0].mxu0 %v1114
      %v1275 = vpop.f32.mrb[0].mxu0
      %v1276 = vadd.f32 0.0, %v1275
      %v1277 = vpop.f32.mrb[0].mxu0
      %v1278 = vadd.f32 0.0, %v1277
      %1279 = vmatprep.mubr.f32.mxu0 0.0
      %1280 = vmatmul.mubr.f32.gmra.mrb[0].mxu0 %v1117
      %v1281 = vpop.f32.mrb[0].mxu0
      %v1282 = vadd.f32 0.0, %v1281
      %v1283 = vpop.f32.mrb[0].mxu0
      %v1284 = vadd.f32 0.0, %v1283
      %1285 = vdwg.mxu0
      %1286 = vmatprep.subr.mxu0 0.0
      %1287 = vmatpush1.msra.mxu0 %v1123
      %1288 = vmatprep.subr.mxu0 0.0
      %1289 = vmatpush1.msra.mxu0 0.0
      %1290 = vmatprep.subr.mxu0 0.0
      %1291 = vmatpush1.msra.mxu0 0.0
      %1292 = vmatprep.subr.mxu0 0.0
      %1293 = vmatpush1.msra.mxu0 0.0
      %1294 = vmatprep.subr.mxu0 0.0
      %1295 = vmatpush1.msra.mxu0 0.0
      %1296 = vmatprep.subr.mxu0 0.0
      %1297 = vmatpush1.msra.mxu0 0.0
      %1298 = vmatprep.subr.mxu0 0.0
      %1299 = vmatpush1.msra.mxu0 0.0
      %1300 = vmatprep.subr.mxu0 0.0
      %1301 = vmatpush1.msra.mxu0 0.0
      %1302 = vmatprep.subr.mxu0 0.0
      %1303 = vmatpush1.msra.mxu0 0.0
      %1304 = vmatprep.subr.mxu0 0.0
      %1305 = vmatpush1.msra.mxu0 0.0
      %1306 = vmatprep.subr.mxu0 0.0
      %1307 = vmatpush1.msra.mxu0 0.0
      %1308 = vmatprep.subr.mxu0 0.0
      %1309 = vmatpush1.msra.mxu0 0.0
      %1310 = vmatprep.subr.mxu0 0.0
      %1311 = vmatpush1.msra.mxu0 0.0
      %1312 = vmatprep.subr.mxu0 0.0
      %1313 = vmatpush1.msra.mxu0 0.0
      %1314 = vmatprep.subr.mxu0 0.0
      %1315 = vmatpush1.msra.mxu0 0.0
      %1316 = vmatprep.subr.mxu0 0.0
      %1317 = vmatpush1.msra.mxu0 0.0
      %1318 = vmatprep.subr.mxu0 0.0
      %1319 = vmatpush1.msra.mxu0 0.0
      %1320 = vmatprep.subr.mxu0 0.0
      %1321 = vmatpush1.msra.mxu0 0.0
      %1322 = vmatprep.subr.mxu0 0.0
      %1323 = vmatpush1.msra.mxu0 0.0
      %1324 = vmatprep.subr.mxu0 0.0
      %1325 = vmatpush1.msra.mxu0 0.0
      %1326 = vmatprep.subr.mxu0 0.0
      %1327 = vmatpush1.msra.mxu0 0.0
      %1328 = vmatprep.subr.mxu0 0.0
      %1329 = vmatpush1.msra.mxu0 0.0
      %1330 = vmatprep.subr.mxu0 0.0
      %1331 = vmatpush1.msra.mxu0 0.0
      %1332 = vmatprep.subr.mxu0 0.0
      %1333 = vmatpush1.msra.mxu0 0.0
      %1334 = vmatprep.subr.mxu0 0.0
      %1335 = vmatpush1.msra.mxu0 0.0
      %1336 = vmatprep.subr.mxu0 0.0
      %1337 = vmatpush1.msra.mxu0 0.0
      %1338 = vmatprep.subr.mxu0 0.0
      %1339 = vmatpush1.msra.mxu0 0.0
      %1340 = vmatprep.subr.mxu0 0.0
      %1341 = vmatpush1.msra.mxu0 0.0
      %1342 = vmatprep.subr.mxu0 0.0
      %1343 = vmatpush1.msra.mxu0 0.0
      %1344 = vmatprep.subr.mxu0 0.0
      %1345 = vmatpush1.msra.mxu0 0.0
      %1346 = vmatprep.subr.mxu0 0.0
      %1347 = vmatpush1.msra.mxu0 0.0
      %1348 = vmatprep.subr.mxu0 0.0
      %1349 = vmatpush1.msra.mxu0 0.0
      %1350 = vmatprep.mubr.f32.mxu0 0.0
      %1351 = vmatmul.mubr.f32.gmra.mrb[0].mxu0 %v1072
      %v1352 = vpop.f32.mrb[0].mxu0
      %v1353 = vadd.f32 0.0, %v1352
      %v1354 = vpop.f32.mrb[0].mxu0
      %1355 = vmatprep.mubr.f32.mxu0 0.0
      %1356 = vmatmul.mubr.f32.gmra.mrb[0].mxu0 %v1075
      %v1357 = vpop.f32.mrb[0].mxu0
      %v1358 = vadd.f32 0.0, %v1357
      %v1359 = vpop.f32.mrb[0].mxu0
      %1360 = vmatprep.mubr.f32.mxu0 0.0
      %1361 = vmatmul.mubr.f32.gmra.mrb[0].mxu0 %v1078
      %v1362 = vpop.f32.mrb[0].mxu0
      %v1363 = vadd.f32 0.0, %v1362
      %v1364 = vpop.f32.mrb[0].mxu0
      %1365 = vmatprep.mubr.f32.mxu0 0.0
      %1366 = vmatmul.mubr.f32.gmra.mrb[0].mxu0 %v1081
      %v1367 = vpop.f32.mrb[0].mxu0
      %v1368 = vadd.f32 0.0, %v1367
      %v1369 = vpop.f32.mrb[0].mxu0
      %1370 = vmatprep.mubr.f32.mxu0 0.0
      %1371 = vmatmul.mubr.f32.gmra.mrb[0].mxu0 %v1084
      %v1372 = vpop.f32.mrb[0].mxu0
      %v1373 = vadd.f32 0.0, %v1372
      %v1374 = vpop.f32.mrb[0].mxu0
      %1375 = vmatprep.mubr.f32.mxu0 0.0
      %1376 = vmatmul.mubr.f32.gmra.mrb[0].mxu0 %v1087
      %v1377 = vpop.f32.mrb[0].mxu0
      %v1378 = vadd.f32 0.0, %v1377
      %v1379 = vpop.f32.mrb[0].mxu0
      %1380 = vmatprep.mubr.f32.mxu0 0.0
      %1381 = vmatmul.mubr.f32.gmra.mrb[0].mxu0 %v1090
      %v1382 = vpop.f32.mrb[0].mxu0
      %v1383 = vadd.f32 0.0, %v1382
      %v1384 = vpop.f32.mrb[0].mxu0
      %1385 = vmatprep.mubr.f32.mxu0 0.0
      %1386 = vmatmul.mubr.f32.gmra.mrb[0].mxu0 %v1093
      %v1387 = vpop.f32.mrb[0].mxu0
      %v1388 = vadd.f32 0.0, %v1387
      %v1389 = vpop.f32.mrb[0].mxu0
      %1390 = vmatprep.mubr.f32.mxu0 0.0
      %1391 = vmatmul.mubr.f32.gmra.mrb[0].mxu0 %v1096
      %v1392 = vpop.f32.mrb[0].mxu0
      %v1393 = vadd.f32 0.0, %v1392
      %v1394 = vpop.f32.mrb[0].mxu0
      %1395 = vmatprep.mubr.f32.mxu0 0.0
      %1396 = vmatmul.mubr.f32.gmra.mrb[0].mxu0 %v1099
      %v1397 = vpop.f32.mrb[0].mxu0
      %v1398 = vadd.f32 0.0, %v1397
      %v1399 = vpop.f32.mrb[0].mxu0
      %1400 = vmatprep.mubr.f32.mxu0 0.0
      %1401 = vmatmul.mubr.f32.gmra.mrb[0].mxu0 %v1102
      %v1402 = vpop.f32.mrb[0].mxu0
      %v1403 = vadd.f32 0.0, %v1402
      %v1404 = vpop.f32.mrb[0].mxu0
      %1405 = vmatprep.mubr.f32.mxu0 0.0
      %1406 = vmatmul.mubr.f32.gmra.mrb[0].mxu0 %v1105
      %v1407 = vpop.f32.mrb[0].mxu0
      %v1408 = vadd.f32 0.0, %v1407
      %v1409 = vpop.f32.mrb[0].mxu0
      %1410 = vmatprep.mubr.f32.mxu0 0.0
      %1411 = vmatmul.mubr.f32.gmra.mrb[0].mxu0 %v1108
      %v1412 = vpop.f32.mrb[0].mxu0
      %v1413 = vadd.f32 0.0, %v1412
      %v1414 = vpop.f32.mrb[0].mxu0
      %1415 = vmatprep.mubr.f32.mxu0 0.0
      %1416 = vmatmul.mubr.f32.gmra.mrb[0].mxu0 %v1111
      %v1417 = vpop.f32.mrb[0].mxu0
      %v1418 = vadd.f32 0.0, %v1417
      %v1419 = vpop.f32.mrb[0].mxu0
      %1420 = vmatprep.mubr.f32.mxu0 0.0
      %1421 = vmatmul.mubr.f32.gmra.mrb[0].mxu0 %v1114
      %v1422 = vpop.f32.mrb[0].mxu0
      %v1423 = vadd.f32 0.0, %v1422
      %v1424 = vpop.f32.mrb[0].mxu0
      %1425 = vmatprep.mubr.f32.mxu0 0.0
      %1426 = vmatmul.mubr.f32.gmra.mrb[0].mxu0 %v1117
      %v1427 = vpop.f32.mrb[0].mxu0
      %v1428 = vadd.f32 0.0, %v1427
      %v1429 = vpop.f32.mrb[0].mxu0
      %1430 = vdwg.mxu0
      %v1431 = vadd.f32 %v1001, %v1192
      %v1432 = vadd.f32 %v1002, %v1194
      %v1433 = vadd.f32 %v1003, %v1353
      %v1434 = vadd.f32 %v1004, %v1198
      %v1435 = vadd.f32 %v1005, %v1200
      %v1436 = vadd.f32 %v1006, %v1358
      %v1437 = vadd.f32 %v1007, %v1204
      %v1438 = vadd.f32 %v1008, %v1206
      %v1439 = vadd.f32 %v1009, %v1363
      %v1440 = vadd.f32 %v1010, %v1210
      %v1441 = vadd.f32 %v1011, %v1212
      %v1442 = vadd.f32 %v1012, %v1368
      %v1443 = vadd.f32 %v1013, %v1216
      %v1444 = vadd.f32 %v1014, %v1218
      %v1445 = vadd.f32 %v1015, %v1373
      %v1446 = vadd.f32 %v1016, %v1222
      %v1447 = vadd.f32 %v1017, %v1224
      %v1448 = vadd.f32 %v1018, %v1378
      %v1449 = vadd.f32 %v1019, %v1228
      %v1450 = vadd.f32 %v1020, %v1230
      %v1451 = vadd.f32 %v1021, %v1383
      %v1452 = vadd.f32 %v1022, %v1234
      %v1453 = vadd.f32 %v1023, %v1236
      %v1454 = vadd.f32 %v1024, %v1388
      %v1455 = vadd.f32 %v1025, %v1240
      %v1456 = vadd.f32 %v1026, %v1242
      %v1457 = vadd.f32 %v1027, %v1393
      %v1458 = vadd.f32 %v1028, %v1246
      %v1459 = vadd.f32 %v1029, %v1248
      %v1460 = vadd.f32 %v1030, %v1398
      %v1461 = vadd.f32 %v1031, %v1252
      %v1462 = vadd.f32 %v1032, %v1254
      %v1463 = vadd.f32 %v1033, %v1403
      %v1464 = vadd.f32 %v1034, %v1258
      %v1465 = vadd.f32 %v1035, %v1260
      %v1466 = vadd.f32 %v1036, %v1408
      %v1467 = vadd.f32 %v1037, %v1264
      %v1468 = vadd.f32 %v1038, %v1266
      %v1469 = vadd.f32 %v1039, %v1413
      %v1470 = vadd.f32 %v1040, %v1270
      %v1471 = vadd.f32 %v1041, %v1272
      %v1472 = vadd.f32 %v1042, %v1418
      %v1473 = vadd.f32 %v1043, %v1276
      %v1474 = vadd.f32 %v1044, %v1278
      %v1475 = vadd.f32 %v1045, %v1423
      %v1476 = vadd.f32 %v1046, %v1282
      %v1477 = vadd.f32 %v1047, %v1284
      %v1478 = vadd.f32 %v1048, %v1428
      %v1479 = vxor.u32 %v1432, 2147483648
      %v1480 = vxor.u32 %v1435, 2147483648
      %v1481 = vxor.u32 %v1438, 2147483648
      %v1482 = vxor.u32 %v1441, 2147483648
      %v1483 = vxor.u32 %v1444, 2147483648
      %v1484 = vxor.u32 %v1447, 2147483648
      %v1485 = vxor.u32 %v1450, 2147483648
      %v1486 = vxor.u32 %v1453, 2147483648
      %v1487 = vxor.u32 %v1456, 2147483648
      %v1488 = vxor.u32 %v1459, 2147483648
      %v1489 = vxor.u32 %v1462, 2147483648
      %v1490 = vxor.u32 %v1465, 2147483648
      %v1491 = vxor.u32 %v1468, 2147483648
      %v1492 = vxor.u32 %v1471, 2147483648
      %v1493 = vxor.u32 %v1474, 2147483648
      %v1494 = vxor.u32 %v1477, 2147483648
      %v1495 = vmul.f32 %v1479, 1.442695
      %v1496 = vpow.pop %v1495
      %v1497 = vmul.f32 %v1480, 1.442695
      %v1498 = vpow.pop %v1497
      %v1499 = vmul.f32 %v1481, 1.442695
      %v1500 = vpow.pop %v1499
      %v1501 = vmul.f32 %v1482, 1.442695
      %v1502 = vpow.pop %v1501
      %v1503 = vmul.f32 %v1483, 1.442695
      %v1504 = vpow.pop %v1503
      %v1505 = vmul.f32 %v1484, 1.442695
      %v1506 = vpow.pop %v1505
      %v1507 = vmul.f32 %v1485, 1.442695
      %v1508 = vpow.pop %v1507
      %v1509 = vmul.f32 %v1486, 1.442695
      %v1510 = vpow.pop %v1509
      %v1511 = vmul.f32 %v1487, 1.442695
      %v1512 = vpow.pop %v1511
      %v1513 = vmul.f32 %v1488, 1.442695
      %v1514 = vpow.pop %v1513
      %v1515 = vmul.f32 %v1489, 1.442695
      %v1516 = vpow.pop %v1515
      %v1517 = vmul.f32 %v1490, 1.442695
      %v1518 = vpow.pop %v1517
      %v1519 = vmul.f32 %v1491, 1.442695
      %v1520 = vpow.pop %v1519
      %v1521 = vmul.f32 %v1492, 1.442695
      %v1522 = vpow.pop %v1521
      %v1523 = vmul.f32 %v1493, 1.442695
      %v1524 = vpow.pop %v1523
      %v1525 = vmul.f32 %v1494, 1.442695
      %v1526 = vpow.pop %v1525
      %v1527 = vadd.f32 %v1496, 1.0
      %v1528 = vadd.f32 %v1498, 1.0
      %v1529 = vadd.f32 %v1500, 1.0
      %v1530 = vadd.f32 %v1502, 1.0
      %v1531 = vadd.f32 %v1504, 1.0
      %v1532 = vadd.f32 %v1506, 1.0
      %v1533 = vadd.f32 %v1508, 1.0
      %v1534 = vadd.f32 %v1510, 1.0
      %v1535 = vadd.f32 %v1512, 1.0
      %v1536 = vadd.f32 %v1514, 1.0
      %v1537 = vadd.f32 %v1516, 1.0
      %v1538 = vadd.f32 %v1518, 1.0
      %v1539 = vadd.f32 %v1520, 1.0
      %v1540 = vadd.f32 %v1522, 1.0
      %v1541 = vadd.f32 %v1524, 1.0
      %v1542 = vadd.f32 %v1526, 1.0
      %v1543 = vrcp.pop %v1527
      %v1544 = vmul.f32 1.0, %v1543
      %v1545 = vrcp.pop %v1528
      %v1546 = vmul.f32 1.0, %v1545
      %v1547 = vrcp.pop %v1529
      %v1548 = vmul.f32 1.0, %v1547
      %v1549 = vrcp.pop %v1530
      %v1550 = vmul.f32 1.0, %v1549
      %v1551 = vrcp.pop %v1531
      %v1552 = vmul.f32 1.0, %v1551
      %v1553 = vrcp.pop %v1532
      %v1554 = vmul.f32 1.0, %v1553
      %v1555 = vrcp.pop %v1533
      %v1556 = vmul.f32 1.0, %v1555
      %v1557 = vrcp.pop %v1534
      %v1558 = vmul.f32 1.0, %v1557
      %v1559 = vrcp.pop %v1535
      %v1560 = vmul.f32 1.0, %v1559
      %v1561 = vrcp.pop %v1536
      %v1562 = vmul.f32 1.0, %v1561
      %v1563 = vrcp.pop %v1537
      %v1564 = vmul.f32 1.0, %v1563
      %v1565 = vrcp.pop %v1538
      %v1566 = vmul.f32 1.0, %v1565
      %v1567 = vrcp.pop %v1539
      %v1568 = vmul.f32 1.0, %v1567
      %v1569 = vrcp.pop %v1540
      %v1570 = vmul.f32 1.0, %v1569
      %v1571 = vrcp.pop %v1541
      %v1572 = vmul.f32 1.0, %v1571
      %v1573 = vrcp.pop %v1542
      %v1574 = vmul.f32 1.0, %v1573
      %v1575 = vmul.f32 %v1431, %v1544
      %v1576 = vmul.f32 %v1434, %v1546
      %v1577 = vmul.f32 %v1437, %v1548
      %v1578 = vmul.f32 %v1440, %v1550
      %v1579 = vmul.f32 %v1443, %v1552
      %v1580 = vmul.f32 %v1446, %v1554
      %v1581 = vmul.f32 %v1449, %v1556
      %v1582 = vmul.f32 %v1452, %v1558
      %v1583 = vmul.f32 %v1455, %v1560
      %v1584 = vmul.f32 %v1458, %v1562
      %v1585 = vmul.f32 %v1461, %v1564
      %v1586 = vmul.f32 %v1464, %v1566
      %v1587 = vmul.f32 %v1467, %v1568
      %v1588 = vmul.f32 %v1470, %v1570
      %v1589 = vmul.f32 %v1473, %v1572
      %v1590 = vmul.f32 %v1476, %v1574
      %v1591 = vadd.f32 %v1575, %v1433
      %v1592 = vadd.f32 %v1576, %v1436
      %v1593 = vadd.f32 %v1577, %v1439
      %v1594 = vadd.f32 %v1578, %v1442
      %v1595 = vadd.f32 %v1579, %v1445
      %v1596 = vadd.f32 %v1580, %v1448
      %v1597 = vadd.f32 %v1581, %v1451
      %v1598 = vadd.f32 %v1582, %v1454
      %v1599 = vadd.f32 %v1583, %v1457
      %v1600 = vadd.f32 %v1584, %v1460
      %v1601 = vadd.f32 %v1585, %v1463
      %v1602 = vadd.f32 %v1586, %v1466
      %v1603 = vadd.f32 %v1587, %v1469
      %v1604 = vadd.f32 %v1588, %v1472
      %v1605 = vadd.f32 %v1589, %v1475
      %v1606 = vadd.f32 %v1590, %v1478
      %v1607 = vmax.f32 %v1591, 0.0
      %v1608 = vmax.f32 %v1592, 0.0
      %v1609 = vmax.f32 %v1593, 0.0
      %v1610 = vmax.f32 %v1594, 0.0
      %v1611 = vmax.f32 %v1595, 0.0
      %v1612 = vmax.f32 %v1596, 0.0
      %v1613 = vmax.f32 %v1597, 0.0
      %v1614 = vmax.f32 %v1598, 0.0
      %v1615 = vmax.f32 %v1599, 0.0
      %v1616 = vmax.f32 %v1600, 0.0
      %v1617 = vmax.f32 %v1601, 0.0
      %v1618 = vmax.f32 %v1602, 0.0
      %v1619 = vmax.f32 %v1603, 0.0
      %v1620 = vmax.f32 %v1604, 0.0
      %v1621 = vmax.f32 %v1605, 0.0
      %v1622 = vmax.f32 %v1606, 0.0
      %1623 = vst [vmem:[%s170] sm:$0xff] %v1607
      %1624 = vst [vmem:[%s170 + $0x8] sm:$0xff] %v1608
      %1625 = vst [vmem:[%s170 + $0x10] sm:$0xff] %v1609
      %1626 = vst [vmem:[%s170 + $0x18] sm:$0xff] %v1610
      %1627 = vst [vmem:[%s170 + $0x20] sm:$0xff] %v1611
      %1628 = vst [vmem:[%s170 + $0x28] sm:$0xff] %v1612
      %1629 = vst [vmem:[%s170 + $0x30] sm:$0xff] %v1613
      %1630 = vst [vmem:[%s170 + $0x38] sm:$0xff] %v1614
      %1631 = vst [vmem:[%s170 + $0x40] sm:$0xff] %v1615
      %1632 = vst [vmem:[%s170 + $0x48] sm:$0xff] %v1616
      %1633 = vst [vmem:[%s170 + $0x50] sm:$0xff] %v1617
      %1634 = vst [vmem:[%s170 + $0x58] sm:$0xff] %v1618
      %1635 = vst [vmem:[%s170 + $0x60] sm:$0xff] %v1619
      %1636 = vst [vmem:[%s170 + $0x68] sm:$0xff] %v1620
      %1637 = vst [vmem:[%s170 + $0x70] sm:$0xff] %v1621
      %1638 = vst [vmem:[%s170 + $0x78] sm:$0xff] %v1622
      %p1639 = scmp.lt.s32.totalorder %s14, 1
      %s1640 = scalar_select %p1639, %s14, 1
      %s1641 = smul.addr %s1640, 16
      %s1642 = smul.addr %s1641, 8
      %s1643 = scalar_lea.vmem %s3, %s1642
      // Predicated region
      $region33: #{temporal_conv.1} parent=31 // pred_check
        %p1644 = pneg %p100
      $region34: #{temporal_conv.1} parent=31 // pred_check_branch
        %1646 = sbr.rel (%p1644) target = $region36
      $region35: #{temporal_conv.1} parent=31 // pred_region
        _
      $region36: #{temporal_conv.1} parent=31 // pred_fallthru
        _
    $region32: #{temporal_conv.1} parent=5 // pred_fallthru
      _
    %p1647 = scmp.le.s32.totalorder 2, %s9
    // Predicated region
    $region37: #{temporal_conv.1} parent=5 // pred_check
      %p1648 = pneg %p1647
    $region38: #{temporal_conv.1} parent=5 // pred_check_branch
      %1650 = sbr.rel (%p1648) target = $region40
    $region39: #{temporal_conv.1} parent=5 // pred_region
      %s1651 = ssub.s32 %s9, 2
      // Predicated region
      $region41: #{temporal_conv.1} parent=39 // pred_check
        %p1652 = pneg %p106
      $region42: #{temporal_conv.1} parent=39 // pred_check_branch
        %1654 = sbr.rel (%p1652) target = $region44
      $region43: #{temporal_conv.1} parent=39 // pred_region
        %p1655 = scmp.lt.s32.totalorder %s15, 1
        %s1656 = scalar_select %p1655, %s15, 1
        %s1657 = smul.addr %s1656, 16
        %s1658 = smul.addr %s1657, 8
        %s1659 = scalar_lea.vmem %s3, %s1658
      $region44: #{temporal_conv.1} parent=39 // pred_fallthru
        _
    $region40: #{temporal_conv.1} parent=5 // pred_fallthru
      _
  $region6: #{temporal_conv.1} parent=0 // loop_footer
    %s13 = sadd.s32 1, %s9
  $region7: #{temporal_conv.1} parent=0 // loop_footer_branch
    %8 = sbr.rel target = $region3
  $region8: #{temporal_conv.1} parent=0 // loop_exit
    _

</llo_original>
